<compile_context>
chip_gen: v6e
topology: v6e:2x2x1
jax: 0.10.0
libtpu: 0.0.40
codegen_flags: <defaults>
</compile_context>

<pallas_src>
import functools

import jax
import jax.numpy as jnp
from jax import lax
from jax.experimental import pallas as pl
from jax.experimental.pallas import tpu as pltpu


def _wp_combined_loss_kernel(
    wp_ref,        # (T, Bp, 2)   f32   rows [0:B]=wp_s, [B:2B]=wp_t, rest zero pad
    gates_x_ref,   # (T, Bp, 4H)  f32   precomputed x @ w_ih + b (PyTorch gate order)
    w_pack_ref,    # (H, 4H+FC)   bf16  [w_hh(i,f,g) | w_hh(o) | w_fc]  (all .T layout)
    attn_ref,      # (2, H)       f32   row0 = attention.weight, [1,0] = attention.bias
    out_ref,       # (8, 128)     f32   loss broadcast into a lane-dense block
    *,
    alpha: float,
    hidden: int,
    seq: int,
    batch: int,    # real per-branch batch size B
):
    H, T, B = hidden, seq, batch
    Bp = wp_ref.shape[1]
    FC = w_pack_ref.shape[1] - 4 * H

    # RHS operands loaded once before the unrolled recurrence (bf16, MXU-native).
    w_ifg = w_pack_ref[:, 0:3 * H]               # (H, 3H)  i, f, g gate columns
    w_o = w_pack_ref[:, 3 * H:4 * H]             # (H, H)   o gate columns
    w_fc = w_pack_ref[:, 4 * H:4 * H + FC]       # (H, FC)

    # ---- fused single-layer LSTM recurrence (h kept in vregs, full unroll) ---
    # PyTorch gate order (i, f, g, o); h0 = c0 = 0, so step 0 needs no matmul.
    g0 = gates_x_ref[0]                          # (Bp, 4H) f32
    i_g = jax.nn.sigmoid(g0[:, 0 * H:1 * H])
    f_g = jax.nn.sigmoid(g0[:, 1 * H:2 * H])
    g_g = jnp.tanh(g0[:, 2 * H:3 * H])
    o_g = jax.nn.sigmoid(g0[:, 3 * H:4 * H])
    c = i_g * g_g                                # f_g * c0 == 0
    h = o_g * jnp.tanh(c)
    hs = [h]

    for t in range(1, T):                        # full unroll (T is static)
        h_b = h.astype(jnp.bfloat16)
        gx = gates_x_ref[t]                      # (Bp, 4H) f32
        # (i,f,g) dot first: the c-chain starts as soon as it pops; the o-gate
        # dot overlaps and only joins at h = o * tanh(c).
        g_ifg = (
            jnp.dot(h_b, w_ifg, preferred_element_type=jnp.float32)
            + gx[:, 0:3 * H]
        )
        g_o = (
            jnp.dot(h_b, w_o, preferred_element_type=jnp.float32)
            + gx[:, 3 * H:4 * H]
        )
        i_g = jax.nn.sigmoid(g_ifg[:, 0 * H:1 * H])
        f_g = jax.nn.sigmoid(g_ifg[:, 1 * H:2 * H])
        g_g = jnp.tanh(g_ifg[:, 2 * H:3 * H])
        c = f_g * c + i_g * g_g
        o_g = jax.nn.sigmoid(g_o)
        h = o_g * jnp.tanh(c)
        hs.append(h)

    # ---- attention over time + context (softmax over T == torch dim=1) -------
    w_attn = attn_ref[0:1, :]                    # (1, H)
    b_attn = attn_ref[1:2, 0:1]                  # (1, 1)
    scores = [
        jnp.sum(hs[t] * w_attn, axis=-1, keepdims=True) + b_attn  # (Bp, 1)
        for t in range(T)
    ]
    m = scores[0]
    for t in range(1, T):
        m = jnp.maximum(m, scores[t])
    es = [jnp.exp(s - m) for s in scores]
    denom = es[0]
    for t in range(1, T):
        denom = denom + es[t]
    inv = 1.0 / denom                            # exact; off the serial chain
    context = hs[0] * (es[0] * inv)
    for t in range(1, T):
        context = context + hs[t] * (es[t] * inv)          # (Bp, H)

    # ---- fc difference fusion: feat_s - feat_t == (ctx_s - ctx_t) @ w_fc ------
    ctx_diff = context[0:B, :] - context[B:2 * B, :]        # (B, H)
    feat_diff = jnp.dot(
        ctx_diff.astype(jnp.bfloat16), w_fc, preferred_element_type=jnp.float32
    )                                                       # (B, FC)
    global_loss = (
        jnp.sum(feat_diff * feat_diff, axis=1, keepdims=True) * (1.0 / FC)
    )                                                       # (B, 1)

    # ---- local waypoint MSE (padded rows never enter the loss) ---------------
    wp_all = wp_ref[...]                                    # (T, Bp, 2)
    wp_diff = wp_all[:, 0:B, :] - wp_all[:, B:2 * B, :]     # (T, B, 2)
    sq = wp_diff * wp_diff
    local_loss = (
        jnp.sum(jnp.sum(sq, axis=0), axis=1, keepdims=True) * (1.0 / (T * 2))
    )                                                       # (B, 1)

    per_example = alpha * global_loss + (1.0 - alpha) * local_loss
    loss = jnp.sum(per_example) * (1.0 / B)

    # Lane-dense unmasked store; wrapper reads element [0, 0].
    out_ref[...] = jnp.full(out_ref.shape, loss, dtype=jnp.float32)


def wp_combined_loss(wp_s, wp_t, params, alpha=0.5):
    """wp_s, wp_t: (B, T, 2) float32.  Returns scalar combined loss (float32)."""
    B, T, D = wp_s.shape
    assert D == 2 and wp_t.shape == (B, T, D)
    H = params["w_hh"].shape[0]
    FC = params["w_fc"].shape[1]

    # Fuse the two branches along batch, go time-major, pad the fused batch
    # up to a sublane-full multiple of 8 (padded rows are zero and excluded
    # from the loss inside the kernel).
    wp_cat = jnp.concatenate(
        [wp_s.astype(jnp.float32), wp_t.astype(jnp.float32)], axis=0
    )                                                        # (2B, T, 2)
    wp_tm = jnp.transpose(wp_cat, (1, 0, 2))                 # (T, 2B, 2)
    bc = 2 * B
    bp = max(8, ((bc + 7) // 8) * 8)
    if bp != bc:
        wp_tm = jnp.pad(wp_tm, ((0, 0), (0, bp - bc), (0, 0)))

    # Input projection folded into the existing XLA preprocessing fusion
    # (removes the K=2 matmul + relayout from the kernel's critical path).
    gates_x = (
        wp_tm.reshape(T * bp, 2) @ params["w_ih"].astype(jnp.float32)
        + params["b_gates"].astype(jnp.float32)
    ).reshape(T, bp, 4 * H).astype(jnp.float32)

    # One packed bf16 array for the large matmul operands:
    # columns = [w_hh(i,f,g) | w_hh(o) | w_fc]   (PyTorch gate column order).
    w_pack = jnp.concatenate(
        [params["w_hh"], params["w_fc"]], axis=1
    ).astype(jnp.bfloat16)                                   # (H, 4H + FC)

    # One small f32 array for the attention parameters.
    attn_pack = jnp.concatenate(
        [
            params["w_attn"].astype(jnp.float32),
            jnp.zeros((1, H), jnp.float32).at[0, 0].set(params["b_attn"][0, 0]),
        ],
        axis=0,
    )                                                        # (2, H)

    kernel = functools.partial(
        _wp_combined_loss_kernel,
        alpha=float(alpha), hidden=H, seq=T, batch=B,
    )
    vmem = pl.BlockSpec(memory_space=pltpu.MemorySpace.VMEM)
    out = pl.pallas_call(
        kernel,
        out_shape=jax.ShapeDtypeStruct((8, 128), jnp.float32),
        in_specs=[vmem] * 4,
        out_specs=vmem,
    )(wp_tm, gates_x, w_pack, attn_pack)
    return out[0, 0]


def init_params(key, hidden=128, fc_out=64, input_size=2):
    """Deterministic parameter init mimicking PyTorch default U(-1/sqrt(H), 1/sqrt(H))."""
    ks = jax.random.split(key, 8)
    bound = 1.0 / jnp.sqrt(hidden)

    def u(k, shape):
        return jax.random.uniform(k, shape, jnp.float32, -bound, bound)

    w_ih = u(ks[0], (input_size, 4 * hidden))       # weight_ih_l0.T
    w_hh = u(ks[1], (hidden, 4 * hidden))           # weight_hh_l0.T
    b_ih = u(ks[2], (1, 4 * hidden))
    b_hh = u(ks[3], (1, 4 * hidden))
    w_attn = u(ks[4], (1, hidden))                  # attention.weight (1, H)
    b_attn = u(ks[5], (1, 1))
    w_fc = u(ks[6], (hidden, fc_out))               # fc.weight.T
    b_fc = u(ks[7], (1, fc_out))
    return {
        "w_ih": w_ih,
        "w_hh": w_hh,
        "b_gates": b_ih + b_hh,
        "w_attn": w_attn,
        "b_attn": b_attn,
        "w_fc": w_fc,
        "b_fc": b_fc,                               # cancels in the loss; kept for the reference
    }


def wp_combined_loss_ref(wp_s, wp_t, params, alpha=0.5):
    """Pure-JAX reference mirroring the PyTorch module, for validation."""
    B, T, _ = wp_s.shape
    H = params["w_hh"].shape[0]

    def lstm(wp):
        def step(carry, x_t):
            h, c = carry
            gates = x_t @ params["w_ih"] + h @ params["w_hh"] + params["b_gates"][0]
            i = jax.nn.sigmoid(gates[:, 0 * H:1 * H])
            f = jax.nn.sigmoid(gates[:, 1 * H:2 * H])
            g = jnp.tanh(gates[:, 2 * H:3 * H])
            o = jax.nn.sigmoid(gates[:, 3 * H:4 * H])
            c = f * c + i * g
            h = o * jnp.tanh(c)
            return (h, c), h

        h0 = jnp.zeros((B, H), jnp.float32)
        c0 = jnp.zeros((B, H), jnp.float32)
        _, hs = lax.scan(step, (h0, c0), jnp.transpose(wp, (1, 0, 2)))
        return jnp.transpose(hs, (1, 0, 2))  # (B, T, H)

    def branch(wp):
        h = lstm(wp)
        scores = jnp.einsum("bth,h->bt", h, params["w_attn"][0]) + params["b_attn"][0, 0]
        w = jax.nn.softmax(scores, axis=1)
        context = jnp.sum(h * w[:, :, None], axis=1)
        return context @ params["w_fc"] + params["b_fc"][0]

    feat_s, feat_t = branch(wp_s), branch(wp_t)
    global_loss = jnp.mean((feat_s - feat_t) ** 2, axis=1)
    local_loss = jnp.mean((wp_s - wp_t) ** 2, axis=(1, 2))
    return jnp.mean(alpha * global_loss + (1 - alpha) * local_loss)


if __name__ == "__main__":
    key = jax.random.PRNGKey(0)
    k_p, k_s, k_t = jax.random.split(key, 3)

    B, T = 2, 8
    H, FC = 128, 64
    alpha = 0.5

    params = init_params(k_p, hidden=H, fc_out=FC)
    wp_s = jax.random.normal(k_s, (B, T, 2), jnp.float32)
    wp_t = jax.random.normal(k_t, (B, T, 2), jnp.float32)

    loss = jax.block_until_ready(wp_combined_loss(wp_s, wp_t, params, alpha=alpha))
    loss_ref = jax.block_until_ready(
        wp_combined_loss_ref(wp_s, wp_t, params, alpha=alpha)
    )
    # bf16 MXU operands round the recurrence weights/activations (f32 accum),
    # but the exact f32 local-waypoint term dominates the combined loss, so a
    # 1% relative tolerance leaves ample margin.
    assert jnp.allclose(loss, loss_ref, rtol=1e-2, atol=1e-4), (loss, loss_ref)

    print("KERNEL_OK")
</pallas_src>

<mosaic_0001>
module attributes {stable_mosaic.version = 11 : i64} {
  func.func @_wp_combined_loss_kernel(%arg0: memref<8x8x2xf32, #tpu.memory_space<vmem>>, %arg1: memref<8x8x512xf32, #tpu.memory_space<vmem>>, %arg2: memref<128x576xbf16, #tpu.memory_space<vmem>>, %arg3: memref<2x128xf32, #tpu.memory_space<vmem>>, %arg4: memref<8x128xf32, #tpu.memory_space<vmem>>) attributes {dimension_semantics = [], scalar_prefetch = 0 : i64, scratch_operands = 0 : i64, tpu.core_type = #tpu.core_type<tc>} {
    %c0 = arith.constant 0 : index
    %c0_0 = arith.constant 0 : index
    %0 = vector.load %arg2[%c0, %c0_0] : memref<128x576xbf16, #tpu.memory_space<vmem>>, vector<128x384xbf16>
    %c0_1 = arith.constant 0 : index
    %c384 = arith.constant 384 : index
    %1 = vector.load %arg2[%c0_1, %c384] : memref<128x576xbf16, #tpu.memory_space<vmem>>, vector<128x128xbf16>
    %c0_2 = arith.constant 0 : index
    %c512 = arith.constant 512 : index
    %2 = vector.load %arg2[%c0_2, %c512] : memref<128x576xbf16, #tpu.memory_space<vmem>>, vector<128x64xbf16>
    %c0_3 = arith.constant 0 : index
    %c0_4 = arith.constant 0 : index
    %c0_5 = arith.constant 0 : index
    %3 = vector.load %arg1[%c0_3, %c0_4, %c0_5] : memref<8x8x512xf32, #tpu.memory_space<vmem>>, vector<1x8x512xf32>
    %4 = vector.shape_cast %3 : vector<1x8x512xf32> to vector<8x512xf32>
    %5 = vector.extract_strided_slice %4 {offsets = [0, 0], sizes = [8, 128], strides = [1, 1]} : vector<8x512xf32> to vector<8x128xf32>
    %6 = arith.negf %5 : vector<8x128xf32>
    %7 = math.exp %6 : vector<8x128xf32>
    %cst = arith.constant 1.000000e+00 : f32
    %8 = vector.broadcast %cst : f32 to vector<8x128xf32>
    %9 = arith.addf %8, %7 : vector<8x128xf32>
    %10 = arith.divf %8, %9 : vector<8x128xf32>
    %11 = vector.extract_strided_slice %4 {offsets = [0, 256], sizes = [8, 128], strides = [1, 1]} : vector<8x512xf32> to vector<8x128xf32>
    %12 = math.tanh %11 : vector<8x128xf32>
    %13 = vector.extract_strided_slice %4 {offsets = [0, 384], sizes = [8, 128], strides = [1, 1]} : vector<8x512xf32> to vector<8x128xf32>
    %14 = arith.negf %13 : vector<8x128xf32>
    %15 = math.exp %14 : vector<8x128xf32>
    %cst_6 = arith.constant 1.000000e+00 : f32
    %16 = vector.broadcast %cst_6 : f32 to vector<8x128xf32>
    %17 = arith.addf %16, %15 : vector<8x128xf32>
    %18 = arith.divf %16, %17 : vector<8x128xf32>
    %19 = arith.mulf %10, %12 : vector<8x128xf32>
    %20 = math.tanh %19 : vector<8x128xf32>
    %21 = arith.mulf %18, %20 : vector<8x128xf32>
    %22 = arith.truncf %21 : vector<8x128xf32> to vector<8x128xbf16>
    %c1 = arith.constant 1 : index
    %c0_7 = arith.constant 0 : index
    %c0_8 = arith.constant 0 : index
    %23 = vector.load %arg1[%c1, %c0_7, %c0_8] : memref<8x8x512xf32, #tpu.memory_space<vmem>>, vector<1x8x512xf32>
    %24 = vector.shape_cast %23 : vector<1x8x512xf32> to vector<8x512xf32>
    %cst_9 = arith.constant dense<0.000000e+00> : vector<8x384xf32>
    %25 = tpu.matmul %22, %0, %cst_9 {dimension_numbers = #tpu.dot_dimension_numbers<[1], [0], [0], [1], [0, 0, 1, 1], [], []>} : vector<8x128xbf16>, vector<128x384xbf16>, vector<8x384xf32> -> vector<8x384xf32>
    %26 = vector.extract_strided_slice %24 {offsets = [0, 0], sizes = [8, 384], strides = [1, 1]} : vector<8x512xf32> to vector<8x384xf32>
    %27 = arith.addf %25, %26 : vector<8x384xf32>
    %cst_10 = arith.constant dense<0.000000e+00> : vector<8x128xf32>
    %28 = tpu.matmul %22, %1, %cst_10 {dimension_numbers = #tpu.dot_dimension_numbers<[1], [0], [0], [1], [0, 0, 1, 1], [], []>} : vector<8x128xbf16>, vector<128x128xbf16>, vector<8x128xf32> -> vector<8x128xf32>
    %29 = vector.extract_strided_slice %24 {offsets = [0, 384], sizes = [8, 128], strides = [1, 1]} : vector<8x512xf32> to vector<8x128xf32>
    %30 = arith.addf %28, %29 : vector<8x128xf32>
    %31 = vector.extract_strided_slice %27 {offsets = [0, 0], sizes = [8, 128], strides = [1, 1]} : vector<8x384xf32> to vector<8x128xf32>
    %32 = arith.negf %31 : vector<8x128xf32>
    %33 = math.exp %32 : vector<8x128xf32>
    %cst_11 = arith.constant 1.000000e+00 : f32
    %34 = vector.broadcast %cst_11 : f32 to vector<8x128xf32>
    %35 = arith.addf %34, %33 : vector<8x128xf32>
    %36 = arith.divf %34, %35 : vector<8x128xf32>
    %37 = vector.extract_strided_slice %27 {offsets = [0, 128], sizes = [8, 128], strides = [1, 1]} : vector<8x384xf32> to vector<8x128xf32>
    %38 = arith.negf %37 : vector<8x128xf32>
    %39 = math.exp %38 : vector<8x128xf32>
    %cst_12 = arith.constant 1.000000e+00 : f32
    %40 = vector.broadcast %cst_12 : f32 to vector<8x128xf32>
    %41 = arith.addf %40, %39 : vector<8x128xf32>
    %42 = arith.divf %40, %41 : vector<8x128xf32>
    %43 = vector.extract_strided_slice %27 {offsets = [0, 256], sizes = [8, 128], strides = [1, 1]} : vector<8x384xf32> to vector<8x128xf32>
    %44 = math.tanh %43 : vector<8x128xf32>
    %45 = arith.mulf %42, %19 : vector<8x128xf32>
    %46 = arith.mulf %36, %44 : vector<8x128xf32>
    %47 = arith.addf %45, %46 : vector<8x128xf32>
    %48 = arith.negf %30 : vector<8x128xf32>
    %49 = math.exp %48 : vector<8x128xf32>
    %cst_13 = arith.constant 1.000000e+00 : f32
    %50 = vector.broadcast %cst_13 : f32 to vector<8x128xf32>
    %51 = arith.addf %50, %49 : vector<8x128xf32>
    %52 = arith.divf %50, %51 : vector<8x128xf32>
    %53 = math.tanh %47 : vector<8x128xf32>
    %54 = arith.mulf %52, %53 : vector<8x128xf32>
    %55 = arith.truncf %54 : vector<8x128xf32> to vector<8x128xbf16>
    %c2 = arith.constant 2 : index
    %c0_14 = arith.constant 0 : index
    %c0_15 = arith.constant 0 : index
    %56 = vector.load %arg1[%c2, %c0_14, %c0_15] : memref<8x8x512xf32, #tpu.memory_space<vmem>>, vector<1x8x512xf32>
    %57 = vector.shape_cast %56 : vector<1x8x512xf32> to vector<8x512xf32>
    %cst_16 = arith.constant dense<0.000000e+00> : vector<8x384xf32>
    %58 = tpu.matmul %55, %0, %cst_16 {dimension_numbers = #tpu.dot_dimension_numbers<[1], [0], [0], [1], [0, 0, 1, 1], [], []>} : vector<8x128xbf16>, vector<128x384xbf16>, vector<8x384xf32> -> vector<8x384xf32>
    %59 = vector.extract_strided_slice %57 {offsets = [0, 0], sizes = [8, 384], strides = [1, 1]} : vector<8x512xf32> to vector<8x384xf32>
    %60 = arith.addf %58, %59 : vector<8x384xf32>
    %cst_17 = arith.constant dense<0.000000e+00> : vector<8x128xf32>
    %61 = tpu.matmul %55, %1, %cst_17 {dimension_numbers = #tpu.dot_dimension_numbers<[1], [0], [0], [1], [0, 0, 1, 1], [], []>} : vector<8x128xbf16>, vector<128x128xbf16>, vector<8x128xf32> -> vector<8x128xf32>
    %62 = vector.extract_strided_slice %57 {offsets = [0, 384], sizes = [8, 128], strides = [1, 1]} : vector<8x512xf32> to vector<8x128xf32>
    %63 = arith.addf %61, %62 : vector<8x128xf32>
    %64 = vector.extract_strided_slice %60 {offsets = [0, 0], sizes = [8, 128], strides = [1, 1]} : vector<8x384xf32> to vector<8x128xf32>
    %65 = arith.negf %64 : vector<8x128xf32>
    %66 = math.exp %65 : vector<8x128xf32>
    %cst_18 = arith.constant 1.000000e+00 : f32
    %67 = vector.broadcast %cst_18 : f32 to vector<8x128xf32>
    %68 = arith.addf %67, %66 : vector<8x128xf32>
    %69 = arith.divf %67, %68 : vector<8x128xf32>
    %70 = vector.extract_strided_slice %60 {offsets = [0, 128], sizes = [8, 128], strides = [1, 1]} : vector<8x384xf32> to vector<8x128xf32>
    %71 = arith.negf %70 : vector<8x128xf32>
    %72 = math.exp %71 : vector<8x128xf32>
    %cst_19 = arith.constant 1.000000e+00 : f32
    %73 = vector.broadcast %cst_19 : f32 to vector<8x128xf32>
    %74 = arith.addf %73, %72 : vector<8x128xf32>
    %75 = arith.divf %73, %74 : vector<8x128xf32>
    %76 = vector.extract_strided_slice %60 {offsets = [0, 256], sizes = [8, 128], strides = [1, 1]} : vector<8x384xf32> to vector<8x128xf32>
    %77 = math.tanh %76 : vector<8x128xf32>
    %78 = arith.mulf %75, %47 : vector<8x128xf32>
    %79 = arith.mulf %69, %77 : vector<8x128xf32>
    %80 = arith.addf %78, %79 : vector<8x128xf32>
    %81 = arith.negf %63 : vector<8x128xf32>
    %82 = math.exp %81 : vector<8x128xf32>
    %cst_20 = arith.constant 1.000000e+00 : f32
    %83 = vector.broadcast %cst_20 : f32 to vector<8x128xf32>
    %84 = arith.addf %83, %82 : vector<8x128xf32>
    %85 = arith.divf %83, %84 : vector<8x128xf32>
    %86 = math.tanh %80 : vector<8x128xf32>
    %87 = arith.mulf %85, %86 : vector<8x128xf32>
    %88 = arith.truncf %87 : vector<8x128xf32> to vector<8x128xbf16>
    %c3 = arith.constant 3 : index
    %c0_21 = arith.constant 0 : index
    %c0_22 = arith.constant 0 : index
    %89 = vector.load %arg1[%c3, %c0_21, %c0_22] : memref<8x8x512xf32, #tpu.memory_space<vmem>>, vector<1x8x512xf32>
    %90 = vector.shape_cast %89 : vector<1x8x512xf32> to vector<8x512xf32>
    %cst_23 = arith.constant dense<0.000000e+00> : vector<8x384xf32>
    %91 = tpu.matmul %88, %0, %cst_23 {dimension_numbers = #tpu.dot_dimension_numbers<[1], [0], [0], [1], [0, 0, 1, 1], [], []>} : vector<8x128xbf16>, vector<128x384xbf16>, vector<8x384xf32> -> vector<8x384xf32>
    %92 = vector.extract_strided_slice %90 {offsets = [0, 0], sizes = [8, 384], strides = [1, 1]} : vector<8x512xf32> to vector<8x384xf32>
    %93 = arith.addf %91, %92 : vector<8x384xf32>
    %cst_24 = arith.constant dense<0.000000e+00> : vector<8x128xf32>
    %94 = tpu.matmul %88, %1, %cst_24 {dimension_numbers = #tpu.dot_dimension_numbers<[1], [0], [0], [1], [0, 0, 1, 1], [], []>} : vector<8x128xbf16>, vector<128x128xbf16>, vector<8x128xf32> -> vector<8x128xf32>
    %95 = vector.extract_strided_slice %90 {offsets = [0, 384], sizes = [8, 128], strides = [1, 1]} : vector<8x512xf32> to vector<8x128xf32>
    %96 = arith.addf %94, %95 : vector<8x128xf32>
    %97 = vector.extract_strided_slice %93 {offsets = [0, 0], sizes = [8, 128], strides = [1, 1]} : vector<8x384xf32> to vector<8x128xf32>
    %98 = arith.negf %97 : vector<8x128xf32>
    %99 = math.exp %98 : vector<8x128xf32>
    %cst_25 = arith.constant 1.000000e+00 : f32
    %100 = vector.broadcast %cst_25 : f32 to vector<8x128xf32>
    %101 = arith.addf %100, %99 : vector<8x128xf32>
    %102 = arith.divf %100, %101 : vector<8x128xf32>
    %103 = vector.extract_strided_slice %93 {offsets = [0, 128], sizes = [8, 128], strides = [1, 1]} : vector<8x384xf32> to vector<8x128xf32>
    %104 = arith.negf %103 : vector<8x128xf32>
    %105 = math.exp %104 : vector<8x128xf32>
    %cst_26 = arith.constant 1.000000e+00 : f32
    %106 = vector.broadcast %cst_26 : f32 to vector<8x128xf32>
    %107 = arith.addf %106, %105 : vector<8x128xf32>
    %108 = arith.divf %106, %107 : vector<8x128xf32>
    %109 = vector.extract_strided_slice %93 {offsets = [0, 256], sizes = [8, 128], strides = [1, 1]} : vector<8x384xf32> to vector<8x128xf32>
    %110 = math.tanh %109 : vector<8x128xf32>
    %111 = arith.mulf %108, %80 : vector<8x128xf32>
    %112 = arith.mulf %102, %110 : vector<8x128xf32>
    %113 = arith.addf %111, %112 : vector<8x128xf32>
    %114 = arith.negf %96 : vector<8x128xf32>
    %115 = math.exp %114 : vector<8x128xf32>
    %cst_27 = arith.constant 1.000000e+00 : f32
    %116 = vector.broadcast %cst_27 : f32 to vector<8x128xf32>
    %117 = arith.addf %116, %115 : vector<8x128xf32>
    %118 = arith.divf %116, %117 : vector<8x128xf32>
    %119 = math.tanh %113 : vector<8x128xf32>
    %120 = arith.mulf %118, %119 : vector<8x128xf32>
    %121 = arith.truncf %120 : vector<8x128xf32> to vector<8x128xbf16>
    %c4 = arith.constant 4 : index
    %c0_28 = arith.constant 0 : index
    %c0_29 = arith.constant 0 : index
    %122 = vector.load %arg1[%c4, %c0_28, %c0_29] : memref<8x8x512xf32, #tpu.memory_space<vmem>>, vector<1x8x512xf32>
    %123 = vector.shape_cast %122 : vector<1x8x512xf32> to vector<8x512xf32>
    %cst_30 = arith.constant dense<0.000000e+00> : vector<8x384xf32>
    %124 = tpu.matmul %121, %0, %cst_30 {dimension_numbers = #tpu.dot_dimension_numbers<[1], [0], [0], [1], [0, 0, 1, 1], [], []>} : vector<8x128xbf16>, vector<128x384xbf16>, vector<8x384xf32> -> vector<8x384xf32>
    %125 = vector.extract_strided_slice %123 {offsets = [0, 0], sizes = [8, 384], strides = [1, 1]} : vector<8x512xf32> to vector<8x384xf32>
    %126 = arith.addf %124, %125 : vector<8x384xf32>
    %cst_31 = arith.constant dense<0.000000e+00> : vector<8x128xf32>
    %127 = tpu.matmul %121, %1, %cst_31 {dimension_numbers = #tpu.dot_dimension_numbers<[1], [0], [0], [1], [0, 0, 1, 1], [], []>} : vector<8x128xbf16>, vector<128x128xbf16>, vector<8x128xf32> -> vector<8x128xf32>
    %128 = vector.extract_strided_slice %123 {offsets = [0, 384], sizes = [8, 128], strides = [1, 1]} : vector<8x512xf32> to vector<8x128xf32>
    %129 = arith.addf %127, %128 : vector<8x128xf32>
    %130 = vector.extract_strided_slice %126 {offsets = [0, 0], sizes = [8, 128], strides = [1, 1]} : vector<8x384xf32> to vector<8x128xf32>
    %131 = arith.negf %130 : vector<8x128xf32>
    %132 = math.exp %131 : vector<8x128xf32>
    %cst_32 = arith.constant 1.000000e+00 : f32
    %133 = vector.broadcast %cst_32 : f32 to vector<8x128xf32>
    %134 = arith.addf %133, %132 : vector<8x128xf32>
    %135 = arith.divf %133, %134 : vector<8x128xf32>
    %136 = vector.extract_strided_slice %126 {offsets = [0, 128], sizes = [8, 128], strides = [1, 1]} : vector<8x384xf32> to vector<8x128xf32>
    %137 = arith.negf %136 : vector<8x128xf32>
    %138 = math.exp %137 : vector<8x128xf32>
    %cst_33 = arith.constant 1.000000e+00 : f32
    %139 = vector.broadcast %cst_33 : f32 to vector<8x128xf32>
    %140 = arith.addf %139, %138 : vector<8x128xf32>
    %141 = arith.divf %139, %140 : vector<8x128xf32>
    %142 = vector.extract_strided_slice %126 {offsets = [0, 256], sizes = [8, 128], strides = [1, 1]} : vector<8x384xf32> to vector<8x128xf32>
    %143 = math.tanh %142 : vector<8x128xf32>
    %144 = arith.mulf %141, %113 : vector<8x128xf32>
    %145 = arith.mulf %135, %143 : vector<8x128xf32>
    %146 = arith.addf %144, %145 : vector<8x128xf32>
    %147 = arith.negf %129 : vector<8x128xf32>
    %148 = math.exp %147 : vector<8x128xf32>
    %cst_34 = arith.constant 1.000000e+00 : f32
    %149 = vector.broadcast %cst_34 : f32 to vector<8x128xf32>
    %150 = arith.addf %149, %148 : vector<8x128xf32>
    %151 = arith.divf %149, %150 : vector<8x128xf32>
    %152 = math.tanh %146 : vector<8x128xf32>
    %153 = arith.mulf %151, %152 : vector<8x128xf32>
    %154 = arith.truncf %153 : vector<8x128xf32> to vector<8x128xbf16>
    %c5 = arith.constant 5 : index
    %c0_35 = arith.constant 0 : index
    %c0_36 = arith.constant 0 : index
    %155 = vector.load %arg1[%c5, %c0_35, %c0_36] : memref<8x8x512xf32, #tpu.memory_space<vmem>>, vector<1x8x512xf32>
    %156 = vector.shape_cast %155 : vector<1x8x512xf32> to vector<8x512xf32>
    %cst_37 = arith.constant dense<0.000000e+00> : vector<8x384xf32>
    %157 = tpu.matmul %154, %0, %cst_37 {dimension_numbers = #tpu.dot_dimension_numbers<[1], [0], [0], [1], [0, 0, 1, 1], [], []>} : vector<8x128xbf16>, vector<128x384xbf16>, vector<8x384xf32> -> vector<8x384xf32>
    %158 = vector.extract_strided_slice %156 {offsets = [0, 0], sizes = [8, 384], strides = [1, 1]} : vector<8x512xf32> to vector<8x384xf32>
    %159 = arith.addf %157, %158 : vector<8x384xf32>
    %cst_38 = arith.constant dense<0.000000e+00> : vector<8x128xf32>
    %160 = tpu.matmul %154, %1, %cst_38 {dimension_numbers = #tpu.dot_dimension_numbers<[1], [0], [0], [1], [0, 0, 1, 1], [], []>} : vector<8x128xbf16>, vector<128x128xbf16>, vector<8x128xf32> -> vector<8x128xf32>
    %161 = vector.extract_strided_slice %156 {offsets = [0, 384], sizes = [8, 128], strides = [1, 1]} : vector<8x512xf32> to vector<8x128xf32>
    %162 = arith.addf %160, %161 : vector<8x128xf32>
    %163 = vector.extract_strided_slice %159 {offsets = [0, 0], sizes = [8, 128], strides = [1, 1]} : vector<8x384xf32> to vector<8x128xf32>
    %164 = arith.negf %163 : vector<8x128xf32>
    %165 = math.exp %164 : vector<8x128xf32>
    %cst_39 = arith.constant 1.000000e+00 : f32
    %166 = vector.broadcast %cst_39 : f32 to vector<8x128xf32>
    %167 = arith.addf %166, %165 : vector<8x128xf32>
    %168 = arith.divf %166, %167 : vector<8x128xf32>
    %169 = vector.extract_strided_slice %159 {offsets = [0, 128], sizes = [8, 128], strides = [1, 1]} : vector<8x384xf32> to vector<8x128xf32>
    %170 = arith.negf %169 : vector<8x128xf32>
    %171 = math.exp %170 : vector<8x128xf32>
    %cst_40 = arith.constant 1.000000e+00 : f32
    %172 = vector.broadcast %cst_40 : f32 to vector<8x128xf32>
    %173 = arith.addf %172, %171 : vector<8x128xf32>
    %174 = arith.divf %172, %173 : vector<8x128xf32>
    %175 = vector.extract_strided_slice %159 {offsets = [0, 256], sizes = [8, 128], strides = [1, 1]} : vector<8x384xf32> to vector<8x128xf32>
    %176 = math.tanh %175 : vector<8x128xf32>
    %177 = arith.mulf %174, %146 : vector<8x128xf32>
    %178 = arith.mulf %168, %176 : vector<8x128xf32>
    %179 = arith.addf %177, %178 : vector<8x128xf32>
    %180 = arith.negf %162 : vector<8x128xf32>
    %181 = math.exp %180 : vector<8x128xf32>
    %cst_41 = arith.constant 1.000000e+00 : f32
    %182 = vector.broadcast %cst_41 : f32 to vector<8x128xf32>
    %183 = arith.addf %182, %181 : vector<8x128xf32>
    %184 = arith.divf %182, %183 : vector<8x128xf32>
    %185 = math.tanh %179 : vector<8x128xf32>
    %186 = arith.mulf %184, %185 : vector<8x128xf32>
    %187 = arith.truncf %186 : vector<8x128xf32> to vector<8x128xbf16>
    %c6 = arith.constant 6 : index
    %c0_42 = arith.constant 0 : index
    %c0_43 = arith.constant 0 : index
    %188 = vector.load %arg1[%c6, %c0_42, %c0_43] : memref<8x8x512xf32, #tpu.memory_space<vmem>>, vector<1x8x512xf32>
    %189 = vector.shape_cast %188 : vector<1x8x512xf32> to vector<8x512xf32>
    %cst_44 = arith.constant dense<0.000000e+00> : vector<8x384xf32>
    %190 = tpu.matmul %187, %0, %cst_44 {dimension_numbers = #tpu.dot_dimension_numbers<[1], [0], [0], [1], [0, 0, 1, 1], [], []>} : vector<8x128xbf16>, vector<128x384xbf16>, vector<8x384xf32> -> vector<8x384xf32>
    %191 = vector.extract_strided_slice %189 {offsets = [0, 0], sizes = [8, 384], strides = [1, 1]} : vector<8x512xf32> to vector<8x384xf32>
    %192 = arith.addf %190, %191 : vector<8x384xf32>
    %cst_45 = arith.constant dense<0.000000e+00> : vector<8x128xf32>
    %193 = tpu.matmul %187, %1, %cst_45 {dimension_numbers = #tpu.dot_dimension_numbers<[1], [0], [0], [1], [0, 0, 1, 1], [], []>} : vector<8x128xbf16>, vector<128x128xbf16>, vector<8x128xf32> -> vector<8x128xf32>
    %194 = vector.extract_strided_slice %189 {offsets = [0, 384], sizes = [8, 128], strides = [1, 1]} : vector<8x512xf32> to vector<8x128xf32>
    %195 = arith.addf %193, %194 : vector<8x128xf32>
    %196 = vector.extract_strided_slice %192 {offsets = [0, 0], sizes = [8, 128], strides = [1, 1]} : vector<8x384xf32> to vector<8x128xf32>
    %197 = arith.negf %196 : vector<8x128xf32>
    %198 = math.exp %197 : vector<8x128xf32>
    %cst_46 = arith.constant 1.000000e+00 : f32
    %199 = vector.broadcast %cst_46 : f32 to vector<8x128xf32>
    %200 = arith.addf %199, %198 : vector<8x128xf32>
    %201 = arith.divf %199, %200 : vector<8x128xf32>
    %202 = vector.extract_strided_slice %192 {offsets = [0, 128], sizes = [8, 128], strides = [1, 1]} : vector<8x384xf32> to vector<8x128xf32>
    %203 = arith.negf %202 : vector<8x128xf32>
    %204 = math.exp %203 : vector<8x128xf32>
    %cst_47 = arith.constant 1.000000e+00 : f32
    %205 = vector.broadcast %cst_47 : f32 to vector<8x128xf32>
    %206 = arith.addf %205, %204 : vector<8x128xf32>
    %207 = arith.divf %205, %206 : vector<8x128xf32>
    %208 = vector.extract_strided_slice %192 {offsets = [0, 256], sizes = [8, 128], strides = [1, 1]} : vector<8x384xf32> to vector<8x128xf32>
    %209 = math.tanh %208 : vector<8x128xf32>
    %210 = arith.mulf %207, %179 : vector<8x128xf32>
    %211 = arith.mulf %201, %209 : vector<8x128xf32>
    %212 = arith.addf %210, %211 : vector<8x128xf32>
    %213 = arith.negf %195 : vector<8x128xf32>
    %214 = math.exp %213 : vector<8x128xf32>
    %cst_48 = arith.constant 1.000000e+00 : f32
    %215 = vector.broadcast %cst_48 : f32 to vector<8x128xf32>
    %216 = arith.addf %215, %214 : vector<8x128xf32>
    %217 = arith.divf %215, %216 : vector<8x128xf32>
    %218 = math.tanh %212 : vector<8x128xf32>
    %219 = arith.mulf %217, %218 : vector<8x128xf32>
    %220 = arith.truncf %219 : vector<8x128xf32> to vector<8x128xbf16>
    %c7 = arith.constant 7 : index
    %c0_49 = arith.constant 0 : index
    %c0_50 = arith.constant 0 : index
    %221 = vector.load %arg1[%c7, %c0_49, %c0_50] : memref<8x8x512xf32, #tpu.memory_space<vmem>>, vector<1x8x512xf32>
    %222 = vector.shape_cast %221 : vector<1x8x512xf32> to vector<8x512xf32>
    %cst_51 = arith.constant dense<0.000000e+00> : vector<8x384xf32>
    %223 = tpu.matmul %220, %0, %cst_51 {dimension_numbers = #tpu.dot_dimension_numbers<[1], [0], [0], [1], [0, 0, 1, 1], [], []>} : vector<8x128xbf16>, vector<128x384xbf16>, vector<8x384xf32> -> vector<8x384xf32>
    %224 = vector.extract_strided_slice %222 {offsets = [0, 0], sizes = [8, 384], strides = [1, 1]} : vector<8x512xf32> to vector<8x384xf32>
    %225 = arith.addf %223, %224 : vector<8x384xf32>
    %cst_52 = arith.constant dense<0.000000e+00> : vector<8x128xf32>
    %226 = tpu.matmul %220, %1, %cst_52 {dimension_numbers = #tpu.dot_dimension_numbers<[1], [0], [0], [1], [0, 0, 1, 1], [], []>} : vector<8x128xbf16>, vector<128x128xbf16>, vector<8x128xf32> -> vector<8x128xf32>
    %227 = vector.extract_strided_slice %222 {offsets = [0, 384], sizes = [8, 128], strides = [1, 1]} : vector<8x512xf32> to vector<8x128xf32>
    %228 = arith.addf %226, %227 : vector<8x128xf32>
    %229 = vector.extract_strided_slice %225 {offsets = [0, 0], sizes = [8, 128], strides = [1, 1]} : vector<8x384xf32> to vector<8x128xf32>
    %230 = arith.negf %229 : vector<8x128xf32>
    %231 = math.exp %230 : vector<8x128xf32>
    %cst_53 = arith.constant 1.000000e+00 : f32
    %232 = vector.broadcast %cst_53 : f32 to vector<8x128xf32>
    %233 = arith.addf %232, %231 : vector<8x128xf32>
    %234 = arith.divf %232, %233 : vector<8x128xf32>
    %235 = vector.extract_strided_slice %225 {offsets = [0, 128], sizes = [8, 128], strides = [1, 1]} : vector<8x384xf32> to vector<8x128xf32>
    %236 = arith.negf %235 : vector<8x128xf32>
    %237 = math.exp %236 : vector<8x128xf32>
    %cst_54 = arith.constant 1.000000e+00 : f32
    %238 = vector.broadcast %cst_54 : f32 to vector<8x128xf32>
    %239 = arith.addf %238, %237 : vector<8x128xf32>
    %240 = arith.divf %238, %239 : vector<8x128xf32>
    %241 = vector.extract_strided_slice %225 {offsets = [0, 256], sizes = [8, 128], strides = [1, 1]} : vector<8x384xf32> to vector<8x128xf32>
    %242 = math.tanh %241 : vector<8x128xf32>
    %243 = arith.mulf %240, %212 : vector<8x128xf32>
    %244 = arith.mulf %234, %242 : vector<8x128xf32>
    %245 = arith.addf %243, %244 : vector<8x128xf32>
    %246 = arith.negf %228 : vector<8x128xf32>
    %247 = math.exp %246 : vector<8x128xf32>
    %cst_55 = arith.constant 1.000000e+00 : f32
    %248 = vector.broadcast %cst_55 : f32 to vector<8x128xf32>
    %249 = arith.addf %248, %247 : vector<8x128xf32>
    %250 = arith.divf %248, %249 : vector<8x128xf32>
    %251 = math.tanh %245 : vector<8x128xf32>
    %252 = arith.mulf %250, %251 : vector<8x128xf32>
    %c0_56 = arith.constant 0 : index
    %c0_57 = arith.constant 0 : index
    %253 = vector.load %arg3[%c0_56, %c0_57] : memref<2x128xf32, #tpu.memory_space<vmem>>, vector<1x128xf32>
    %c1_58 = arith.constant 1 : index
    %c0_59 = arith.constant 0 : index
    %254 = vector.load %arg3[%c1_58, %c0_59] : memref<2x128xf32, #tpu.memory_space<vmem>>, vector<1x1xf32>
    %255 = vector.broadcast %253 : vector<1x128xf32> to vector<8x128xf32>
    %256 = arith.mulf %21, %255 : vector<8x128xf32>
    %cst_60 = arith.constant dense<0.000000e+00> : vector<8xf32>
    %257 = vector.multi_reduction <add>, %256, %cst_60 [1] : vector<8x128xf32> to vector<8xf32>
    %258 = vector.shape_cast %257 : vector<8xf32> to vector<8x1xf32>
    %259 = vector.broadcast %254 : vector<1x1xf32> to vector<8x1xf32>
    %260 = arith.addf %258, %259 : vector<8x1xf32>
    %261 = vector.broadcast %253 : vector<1x128xf32> to vector<8x128xf32>
    %262 = arith.mulf %54, %261 : vector<8x128xf32>
    %cst_61 = arith.constant dense<0.000000e+00> : vector<8xf32>
    %263 = vector.multi_reduction <add>, %262, %cst_61 [1] : vector<8x128xf32> to vector<8xf32>
    %264 = vector.shape_cast %263 : vector<8xf32> to vector<8x1xf32>
    %265 = vector.broadcast %254 : vector<1x1xf32> to vector<8x1xf32>
    %266 = arith.addf %264, %265 : vector<8x1xf32>
    %267 = vector.broadcast %253 : vector<1x128xf32> to vector<8x128xf32>
    %268 = arith.mulf %87, %267 : vector<8x128xf32>
    %cst_62 = arith.constant dense<0.000000e+00> : vector<8xf32>
    %269 = vector.multi_reduction <add>, %268, %cst_62 [1] : vector<8x128xf32> to vector<8xf32>
    %270 = vector.shape_cast %269 : vector<8xf32> to vector<8x1xf32>
    %271 = vector.broadcast %254 : vector<1x1xf32> to vector<8x1xf32>
    %272 = arith.addf %270, %271 : vector<8x1xf32>
    %273 = vector.broadcast %253 : vector<1x128xf32> to vector<8x128xf32>
    %274 = arith.mulf %120, %273 : vector<8x128xf32>
    %cst_63 = arith.constant dense<0.000000e+00> : vector<8xf32>
    %275 = vector.multi_reduction <add>, %274, %cst_63 [1] : vector<8x128xf32> to vector<8xf32>
    %276 = vector.shape_cast %275 : vector<8xf32> to vector<8x1xf32>
    %277 = vector.broadcast %254 : vector<1x1xf32> to vector<8x1xf32>
    %278 = arith.addf %276, %277 : vector<8x1xf32>
    %279 = vector.broadcast %253 : vector<1x128xf32> to vector<8x128xf32>
    %280 = arith.mulf %153, %279 : vector<8x128xf32>
    %cst_64 = arith.constant dense<0.000000e+00> : vector<8xf32>
    %281 = vector.multi_reduction <add>, %280, %cst_64 [1] : vector<8x128xf32> to vector<8xf32>
    %282 = vector.shape_cast %281 : vector<8xf32> to vector<8x1xf32>
    %283 = vector.broadcast %254 : vector<1x1xf32> to vector<8x1xf32>
    %284 = arith.addf %282, %283 : vector<8x1xf32>
    %285 = vector.broadcast %253 : vector<1x128xf32> to vector<8x128xf32>
    %286 = arith.mulf %186, %285 : vector<8x128xf32>
    %cst_65 = arith.constant dense<0.000000e+00> : vector<8xf32>
    %287 = vector.multi_reduction <add>, %286, %cst_65 [1] : vector<8x128xf32> to vector<8xf32>
    %288 = vector.shape_cast %287 : vector<8xf32> to vector<8x1xf32>
    %289 = vector.broadcast %254 : vector<1x1xf32> to vector<8x1xf32>
    %290 = arith.addf %288, %289 : vector<8x1xf32>
    %291 = vector.broadcast %253 : vector<1x128xf32> to vector<8x128xf32>
    %292 = arith.mulf %219, %291 : vector<8x128xf32>
    %cst_66 = arith.constant dense<0.000000e+00> : vector<8xf32>
    %293 = vector.multi_reduction <add>, %292, %cst_66 [1] : vector<8x128xf32> to vector<8xf32>
    %294 = vector.shape_cast %293 : vector<8xf32> to vector<8x1xf32>
    %295 = vector.broadcast %254 : vector<1x1xf32> to vector<8x1xf32>
    %296 = arith.addf %294, %295 : vector<8x1xf32>
    %297 = vector.broadcast %253 : vector<1x128xf32> to vector<8x128xf32>
    %298 = arith.mulf %252, %297 : vector<8x128xf32>
    %cst_67 = arith.constant dense<0.000000e+00> : vector<8xf32>
    %299 = vector.multi_reduction <add>, %298, %cst_67 [1] : vector<8x128xf32> to vector<8xf32>
    %300 = vector.shape_cast %299 : vector<8xf32> to vector<8x1xf32>
    %301 = vector.broadcast %254 : vector<1x1xf32> to vector<8x1xf32>
    %302 = arith.addf %300, %301 : vector<8x1xf32>
    %303 = arith.maximumf %260, %266 : vector<8x1xf32>
    %304 = arith.maximumf %303, %272 : vector<8x1xf32>
    %305 = arith.maximumf %304, %278 : vector<8x1xf32>
    %306 = arith.maximumf %305, %284 : vector<8x1xf32>
    %307 = arith.maximumf %306, %290 : vector<8x1xf32>
    %308 = arith.maximumf %307, %296 : vector<8x1xf32>
    %309 = arith.maximumf %308, %302 : vector<8x1xf32>
    %310 = arith.subf %260, %309 : vector<8x1xf32>
    %311 = math.exp %310 : vector<8x1xf32>
    %312 = arith.subf %266, %309 : vector<8x1xf32>
    %313 = math.exp %312 : vector<8x1xf32>
    %314 = arith.subf %272, %309 : vector<8x1xf32>
    %315 = math.exp %314 : vector<8x1xf32>
    %316 = arith.subf %278, %309 : vector<8x1xf32>
    %317 = math.exp %316 : vector<8x1xf32>
    %318 = arith.subf %284, %309 : vector<8x1xf32>
    %319 = math.exp %318 : vector<8x1xf32>
    %320 = arith.subf %290, %309 : vector<8x1xf32>
    %321 = math.exp %320 : vector<8x1xf32>
    %322 = arith.subf %296, %309 : vector<8x1xf32>
    %323 = math.exp %322 : vector<8x1xf32>
    %324 = arith.subf %302, %309 : vector<8x1xf32>
    %325 = math.exp %324 : vector<8x1xf32>
    %326 = arith.addf %311, %313 : vector<8x1xf32>
    %327 = arith.addf %326, %315 : vector<8x1xf32>
    %328 = arith.addf %327, %317 : vector<8x1xf32>
    %329 = arith.addf %328, %319 : vector<8x1xf32>
    %330 = arith.addf %329, %321 : vector<8x1xf32>
    %331 = arith.addf %330, %323 : vector<8x1xf32>
    %332 = arith.addf %331, %325 : vector<8x1xf32>
    %cst_68 = arith.constant 1.000000e+00 : f32
    %333 = vector.broadcast %cst_68 : f32 to vector<8x1xf32>
    %334 = arith.divf %333, %332 : vector<8x1xf32>
    %335 = arith.mulf %311, %334 : vector<8x1xf32>
    %336 = vector.broadcast %335 : vector<8x1xf32> to vector<8x128xf32>
    %337 = arith.mulf %21, %336 : vector<8x128xf32>
    %338 = arith.mulf %313, %334 : vector<8x1xf32>
    %339 = vector.broadcast %338 : vector<8x1xf32> to vector<8x128xf32>
    %340 = arith.mulf %54, %339 : vector<8x128xf32>
    %341 = arith.addf %337, %340 : vector<8x128xf32>
    %342 = arith.mulf %315, %334 : vector<8x1xf32>
    %343 = vector.broadcast %342 : vector<8x1xf32> to vector<8x128xf32>
    %344 = arith.mulf %87, %343 : vector<8x128xf32>
    %345 = arith.addf %341, %344 : vector<8x128xf32>
    %346 = arith.mulf %317, %334 : vector<8x1xf32>
    %347 = vector.broadcast %346 : vector<8x1xf32> to vector<8x128xf32>
    %348 = arith.mulf %120, %347 : vector<8x128xf32>
    %349 = arith.addf %345, %348 : vector<8x128xf32>
    %350 = arith.mulf %319, %334 : vector<8x1xf32>
    %351 = vector.broadcast %350 : vector<8x1xf32> to vector<8x128xf32>
    %352 = arith.mulf %153, %351 : vector<8x128xf32>
    %353 = arith.addf %349, %352 : vector<8x128xf32>
    %354 = arith.mulf %321, %334 : vector<8x1xf32>
    %355 = vector.broadcast %354 : vector<8x1xf32> to vector<8x128xf32>
    %356 = arith.mulf %186, %355 : vector<8x128xf32>
    %357 = arith.addf %353, %356 : vector<8x128xf32>
    %358 = arith.mulf %323, %334 : vector<8x1xf32>
    %359 = vector.broadcast %358 : vector<8x1xf32> to vector<8x128xf32>
    %360 = arith.mulf %219, %359 : vector<8x128xf32>
    %361 = arith.addf %357, %360 : vector<8x128xf32>
    %362 = arith.mulf %325, %334 : vector<8x1xf32>
    %363 = vector.broadcast %362 : vector<8x1xf32> to vector<8x128xf32>
    %364 = arith.mulf %252, %363 : vector<8x128xf32>
    %365 = arith.addf %361, %364 : vector<8x128xf32>
    %366 = vector.extract_strided_slice %365 {offsets = [0, 0], sizes = [2, 128], strides = [1, 1]} : vector<8x128xf32> to vector<2x128xf32>
    %367 = vector.extract_strided_slice %365 {offsets = [2, 0], sizes = [2, 128], strides = [1, 1]} : vector<8x128xf32> to vector<2x128xf32>
    %368 = arith.subf %366, %367 : vector<2x128xf32>
    %369 = arith.truncf %368 : vector<2x128xf32> to vector<2x128xbf16>
    %cst_69 = arith.constant dense<0.000000e+00> : vector<2x64xf32>
    %370 = tpu.matmul %369, %2, %cst_69 {dimension_numbers = #tpu.dot_dimension_numbers<[1], [0], [0], [1], [0, 0, 1, 1], [], []>} : vector<2x128xbf16>, vector<128x64xbf16>, vector<2x64xf32> -> vector<2x64xf32>
    %371 = arith.mulf %370, %370 : vector<2x64xf32>
    %cst_70 = arith.constant dense<0.000000e+00> : vector<2xf32>
    %372 = vector.multi_reduction <add>, %371, %cst_70 [1] : vector<2x64xf32> to vector<2xf32>
    %373 = vector.shape_cast %372 : vector<2xf32> to vector<2x1xf32>
    %cst_71 = arith.constant 1.562500e-02 : f32
    %374 = vector.broadcast %cst_71 : f32 to vector<2x1xf32>
    %375 = arith.mulf %373, %374 : vector<2x1xf32>
    %c0_72 = arith.constant 0 : index
    %c0_73 = arith.constant 0 : index
    %c0_74 = arith.constant 0 : index
    %376 = vector.load %arg0[%c0_72, %c0_73, %c0_74] : memref<8x8x2xf32, #tpu.memory_space<vmem>>, vector<8x8x2xf32>
    %377 = vector.extract_strided_slice %376 {offsets = [0, 0, 0], sizes = [8, 2, 2], strides = [1, 1, 1]} : vector<8x8x2xf32> to vector<8x2x2xf32>
    %378 = vector.extract_strided_slice %376 {offsets = [0, 2, 0], sizes = [8, 2, 2], strides = [1, 1, 1]} : vector<8x8x2xf32> to vector<8x2x2xf32>
    %379 = arith.subf %377, %378 : vector<8x2x2xf32>
    %380 = arith.mulf %379, %379 : vector<8x2x2xf32>
    %cst_75 = arith.constant dense<0.000000e+00> : vector<2x2xf32>
    %381 = vector.multi_reduction <add>, %380, %cst_75 [0] : vector<8x2x2xf32> to vector<2x2xf32>
    %cst_76 = arith.constant dense<0.000000e+00> : vector<2xf32>
    %382 = vector.multi_reduction <add>, %381, %cst_76 [1] : vector<2x2xf32> to vector<2xf32>
    %383 = vector.shape_cast %382 : vector<2xf32> to vector<2x1xf32>
    %cst_77 = arith.constant 6.250000e-02 : f32
    %384 = vector.broadcast %cst_77 : f32 to vector<2x1xf32>
    %385 = arith.mulf %383, %384 : vector<2x1xf32>
    %cst_78 = arith.constant 5.000000e-01 : f32
    %386 = vector.broadcast %cst_78 : f32 to vector<2x1xf32>
    %387 = arith.mulf %386, %375 : vector<2x1xf32>
    %cst_79 = arith.constant 5.000000e-01 : f32
    %388 = vector.broadcast %cst_79 : f32 to vector<2x1xf32>
    %389 = arith.mulf %388, %385 : vector<2x1xf32>
    %390 = arith.addf %387, %389 : vector<2x1xf32>
    %391 = vector.shape_cast %390 : vector<2x1xf32> to vector<1x2x1xf32>
    %cst_80 = arith.constant dense<0.000000e+00> : vector<1xf32>
    %392 = vector.multi_reduction <add>, %391, %cst_80 [1, 2] : vector<1x2x1xf32> to vector<1xf32>
    %393 = vector.shape_cast %392 : vector<1xf32> to vector<1x1x1xf32>
    %394 = vector.extract %393[0, 0, 0] : f32 from vector<1x1x1xf32>
    %cst_81 = arith.constant 5.000000e-01 : f32
    %395 = arith.mulf %394, %cst_81 : f32
    %396 = vector.broadcast %395 : f32 to vector<8x128xf32>
    %c0_82 = arith.constant 0 : index
    %c0_83 = arith.constant 0 : index
    %397 = vector.load %arg4[%c0_82, %c0_83] : memref<8x128xf32, #tpu.memory_space<vmem>>, vector<8x128xf32>
    tpu.vector_store %arg4[%c0_82, %c0_83], %396 {strides = array<i32>} : memref<8x128xf32, #tpu.memory_space<vmem>>, vector<8x128xf32>,
    return
  }
}

</mosaic_0001>

<llo_original>
// kernel: tpu_custom_call.1
$region0: #{tpu_custom_call.1}
  #allocation0 [shape = 'u32[]', space=smem, size = 0x4, offset = 0x4, fixed_abs, tag = 'smem constant byte address 0x4 - core index']
  #allocation1 [shape = 'u32[144,128]{1,0:T(1,128)}', space=vmem, size = 0x12000, scoped, tag = 'internal scratch']
  %s0 = inlined_call_operand.vmem [shape: f32[8,8,2], index: 0, kind: input, shape index: {}]
  %s1 = inlined_call_operand.vmem [shape: f32[8,8,512], index: 1, kind: input, shape index: {}]
  %s2 = inlined_call_operand.vmem [shape: bf16[128,576], index: 2, kind: input, shape index: {}]
  %s3 = inlined_call_operand.vmem [shape: f32[2,128], index: 3, kind: input, shape index: {}]
  %s4 = inlined_call_operand.hbm [shape: f32[8,128], index: 4, kind: output, shape index: {}]
  %s5 = sld [smem:[#allocation0]]
  $region26: #{tpu_custom_call.1} parent=0
    _
  %s7 = ssub.s32 1, %s5
  %s8 = scalar_select 0, %s7, %s5
  $region1: #{tpu_custom_call.1} parent=0
    #allocation2 [shape = 'u8[4096]{0}', space=vmem, size = 0x1000, scoped, tag = 'output window, operand 0, single buffered']
    #allocation3 [shape = 's32[1]{0}', space=sflag, size = 0x4, scoped, tag = 'scoped memory for tpu_custom_call.1']
    %9 = vsyncpa [#allocation3], 0
    // Predicated region
    $region2: #{tpu_custom_call.1} parent=1 // pred_check
      _
    $region3: #{tpu_custom_call.1} parent=1 // pred_check_branch
      %11 = sbr.rel (0) target = $region5
    $region4: #{tpu_custom_call.1} parent=1 // pred_region
      _
    $region5: #{tpu_custom_call.1} parent=1 // pred_fallthru
      _
    // Predicated region
    $region6: #{tpu_custom_call.1} parent=1 // pred_check
      _
    $region7: #{tpu_custom_call.1} parent=1 // pred_check_branch
      %13 = sbr.rel (0) target = $region9
    $region8: #{tpu_custom_call.1} parent=1 // pred_region
      _
    $region9: #{tpu_custom_call.1} parent=1 // pred_fallthru
      _
    // Predicated region
    $region10: #{tpu_custom_call.1} parent=1 // pred_check
      _
    $region11: #{tpu_custom_call.1} parent=1 // pred_check_branch
      %15 = sbr.rel (0) target = $region13
    $region12: #{tpu_custom_call.1} parent=1 // pred_region
      _
    $region13: #{tpu_custom_call.1} parent=1 // pred_fallthru
      _
    // Predicated region
    $region14: #{tpu_custom_call.1} parent=1 // pred_check
      _
    $region15: #{tpu_custom_call.1} parent=1 // pred_check_branch
      %17 = sbr.rel (0) target = $region17
    $region16: #{tpu_custom_call.1} parent=1 // pred_region
      _
    $region17: #{tpu_custom_call.1} parent=1 // pred_fallthru
      _
    %v19 = vld [vmem:[%s2] sm:$0xff]
    %v20 = vld [vmem:[%s2 + $0x8] sm:$0xf]
    %v21 = vld [vmem:[%s2 + $0x14] sm:$0xff]
    %v22 = vld [vmem:[%s2 + $0x1c] sm:$0xf]
    %v23 = vld [vmem:[%s2 + $0x28] sm:$0xff]
    %v24 = vld [vmem:[%s2 + $0x30] sm:$0xf]
    %v25 = vld [vmem:[%s2 + $0x3c] sm:$0xff]
    %v26 = vld [vmem:[%s2 + $0x44] sm:$0xf]
    %v27 = vld [vmem:[%s2 + $0x50] sm:$0xff]
    %v28 = vld [vmem:[%s2 + $0x58] sm:$0xf]
    %v29 = vld [vmem:[%s2 + $0x64] sm:$0xff]
    %v30 = vld [vmem:[%s2 + $0x6c] sm:$0xf]
    %v31 = vld [vmem:[%s2 + $0x78] sm:$0xff]
    %v32 = vld [vmem:[%s2 + $0x80] sm:$0xf]
    %v33 = vld [vmem:[%s2 + $0x8c] sm:$0xff]
    %v34 = vld [vmem:[%s2 + $0x94] sm:$0xf]
    %v35 = vld [vmem:[%s2 + $0xa0] sm:$0xff]
    %v36 = vld [vmem:[%s2 + $0xa8] sm:$0xf]
    %v37 = vld [vmem:[%s2 + $0xb4] sm:$0xff]
    %v38 = vld [vmem:[%s2 + $0xbc] sm:$0xf]
    %v39 = vld [vmem:[%s2 + $0xc8] sm:$0xff]
    %v40 = vld [vmem:[%s2 + $0xd0] sm:$0xf]
    %v41 = vld [vmem:[%s2 + $0xdc] sm:$0xff]
    %v42 = vld [vmem:[%s2 + $0xe4] sm:$0xf]
    %v43 = vld [vmem:[%s2 + $0xf0] sm:$0xff]
    %v44 = vld [vmem:[%s2 + $0xf8] sm:$0xf]
    %v45 = vld [vmem:[%s2 + $0x104] sm:$0xff]
    %v46 = vld [vmem:[%s2 + $0x10c] sm:$0xf]
    %v47 = vld [vmem:[%s2 + $0x118] sm:$0xff]
    %v48 = vld [vmem:[%s2 + $0x120] sm:$0xf]
    %v49 = vld [vmem:[%s2 + $0x12c] sm:$0xff]
    %v50 = vld [vmem:[%s2 + $0x134] sm:$0xf]
    %v51 = vld [vmem:[%s2 + $0xc] sm:$0xf]
    %v52 = vld [vmem:[%s2 + $0x20] sm:$0xf]
    %v53 = vld [vmem:[%s2 + $0x34] sm:$0xf]
    %v54 = vld [vmem:[%s2 + $0x48] sm:$0xf]
    %v55 = vld [vmem:[%s2 + $0x5c] sm:$0xf]
    %v56 = vld [vmem:[%s2 + $0x70] sm:$0xf]
    %v57 = vld [vmem:[%s2 + $0x84] sm:$0xf]
    %v58 = vld [vmem:[%s2 + $0x98] sm:$0xf]
    %v59 = vld [vmem:[%s2 + $0xac] sm:$0xf]
    %v60 = vld [vmem:[%s2 + $0xc0] sm:$0xf]
    %v61 = vld [vmem:[%s2 + $0xd4] sm:$0xf]
    %v62 = vld [vmem:[%s2 + $0xe8] sm:$0xf]
    %v63 = vld [vmem:[%s2 + $0xfc] sm:$0xf]
    %v64 = vld [vmem:[%s2 + $0x110] sm:$0xf]
    %v65 = vld [vmem:[%s2 + $0x124] sm:$0xf]
    %v66 = vld [vmem:[%s2 + $0x138] sm:$0xf]
    %v67 = vld [vmem:[%s2 + $0x10] sm:$0xf]
    %v68 = vld [vmem:[%s2 + $0x24] sm:$0xf]
    %v69 = vld [vmem:[%s2 + $0x38] sm:$0xf]
    %v70 = vld [vmem:[%s2 + $0x4c] sm:$0xf]
    %v71 = vld [vmem:[%s2 + $0x60] sm:$0xf]
    %v72 = vld [vmem:[%s2 + $0x74] sm:$0xf]
    %v73 = vld [vmem:[%s2 + $0x88] sm:$0xf]
    %v74 = vld [vmem:[%s2 + $0x9c] sm:$0xf]
    %v75 = vld [vmem:[%s2 + $0xb0] sm:$0xf]
    %v76 = vld [vmem:[%s2 + $0xc4] sm:$0xf]
    %v77 = vld [vmem:[%s2 + $0xd8] sm:$0xf]
    %v78 = vld [vmem:[%s2 + $0xec] sm:$0xf]
    %v79 = vld [vmem:[%s2 + $0x100] sm:$0xf]
    %v80 = vld [vmem:[%s2 + $0x114] sm:$0xf]
    %v81 = vld [vmem:[%s2 + $0x128] sm:$0xf]
    %v82 = vld [vmem:[%s2 + $0x13c] sm:$0xf]
    %v83 = vld [vmem:[%s1] sm:$0xff]
    %v84 = vld [vmem:[%s1 + $0x10] sm:$0xff]
    %v85 = vld [vmem:[%s1 + $0x18] sm:$0xff]
    %v86 = vxor.u32 %v83, 2147483648
    %v87 = vmul.f32 %v86, 1.442695
    %v88 = vpow.pop %v87
    %v89 = vadd.f32 %v88, 1.0
    %v90 = vrcp.pop %v89
    %v91 = vmul.f32 1.0, %v90
    %v92 = vtanh.pop %v84
    %v93 = vxor.u32 %v85, 2147483648
    %v94 = vmul.f32 %v93, 1.442695
    %v95 = vpow.pop %v94
    %v96 = vadd.f32 %v95, 1.0
    %v97 = vrcp.pop %v96
    %v98 = vmul.f32 1.0, %v97
    %v99 = vmul.f32 %v91, %v92
    %v100 = vtanh.pop %v99
    %v101 = vmul.f32 %v98, %v100
    %v102 = vpack.c.bf16 %v101, %v101
    %s103 = scalar_lea.vmem %s1, 32
    %v104 = vld [vmem:[%s103] sm:$0xff]
    %v105 = vld [vmem:[%s103 + $0x8] sm:$0xff]
    %v106 = vld [vmem:[%s103 + $0x10] sm:$0xff]
    %v107 = vld [vmem:[%s103 + $0x18] sm:$0xff]
    %v140 = vunpack.c.l.b16 %v19
    %v141 = vunpack.c.h.b16 %v19
    %v142 = vunpack.c.l.b16 %v20
    %v143 = vunpack.c.l.b16 %v21
    %v144 = vunpack.c.h.b16 %v21
    %v145 = vunpack.c.l.b16 %v22
    %v146 = vunpack.c.l.b16 %v23
    %v147 = vunpack.c.h.b16 %v23
    %v148 = vunpack.c.l.b16 %v24
    %v149 = vunpack.c.l.b16 %v25
    %v150 = vunpack.c.h.b16 %v25
    %v151 = vunpack.c.l.b16 %v26
    %v152 = vunpack.c.l.b16 %v27
    %v153 = vunpack.c.h.b16 %v27
    %v154 = vunpack.c.l.b16 %v28
    %v155 = vunpack.c.l.b16 %v29
    %v156 = vunpack.c.h.b16 %v29
    %v157 = vunpack.c.l.b16 %v30
    %v158 = vunpack.c.l.b16 %v31
    %v159 = vunpack.c.h.b16 %v31
    %v160 = vunpack.c.l.b16 %v32
    %v161 = vunpack.c.l.b16 %v33
    %v162 = vunpack.c.h.b16 %v33
    %v163 = vunpack.c.l.b16 %v34
    %v164 = vunpack.c.l.b16 %v35
    %v165 = vunpack.c.h.b16 %v35
    %v166 = vunpack.c.l.b16 %v36
    %v167 = vunpack.c.l.b16 %v37
    %v168 = vunpack.c.h.b16 %v37
    %v169 = vunpack.c.l.b16 %v38
    %v170 = vunpack.c.l.b16 %v39
    %v171 = vunpack.c.h.b16 %v39
    %v172 = vunpack.c.l.b16 %v40
    %v173 = vunpack.c.l.b16 %v41
    %v174 = vunpack.c.h.b16 %v41
    %v175 = vunpack.c.l.b16 %v42
    %v176 = vunpack.c.l.b16 %v43
    %v177 = vunpack.c.h.b16 %v43
    %v178 = vunpack.c.l.b16 %v44
    %v179 = vunpack.c.l.b16 %v45
    %v180 = vunpack.c.h.b16 %v45
    %v181 = vunpack.c.l.b16 %v46
    %v182 = vunpack.c.l.b16 %v47
    %v183 = vunpack.c.h.b16 %v47
    %v184 = vunpack.c.l.b16 %v48
    %v185 = vunpack.c.l.b16 %v49
    %v186 = vunpack.c.h.b16 %v49
    %v187 = vunpack.c.l.b16 %v50
    %v188 = vpack.c.b16 %v143, %v140
    %v189 = vpack.c.b16 %v144, %v141
    %v190 = vpack.c.b16 %v145, %v142
    %v191 = vpack.c.b16 %v149, %v146
    %v192 = vpack.c.b16 %v150, %v147
    %v193 = vpack.c.b16 %v151, %v148
    %v194 = vpack.c.b16 %v155, %v152
    %v195 = vpack.c.b16 %v156, %v153
    %v196 = vpack.c.b16 %v157, %v154
    %v197 = vpack.c.b16 %v161, %v158
    %v198 = vpack.c.b16 %v162, %v159
    %v199 = vpack.c.b16 %v163, %v160
    %v200 = vpack.c.b16 %v167, %v164
    %v201 = vpack.c.b16 %v168, %v165
    %v202 = vpack.c.b16 %v169, %v166
    %v203 = vpack.c.b16 %v173, %v170
    %v204 = vpack.c.b16 %v174, %v171
    %v205 = vpack.c.b16 %v175, %v172
    %v206 = vpack.c.b16 %v179, %v176
    %v207 = vpack.c.b16 %v180, %v177
    %v208 = vpack.c.b16 %v181, %v178
    %v209 = vpack.c.b16 %v185, %v182
    %v210 = vpack.c.b16 %v186, %v183
    %v211 = vpack.c.b16 %v187, %v184
    %236 = vmatprep.subr.bf16.mxu0 %v210
    %237 = vmatpush1.bf16.msra.mxu0 %v209
    %238 = vmatprep.subr.bf16.mxu0 %v207
    %239 = vmatpush1.bf16.msra.mxu0 %v206
    %240 = vmatprep.subr.bf16.mxu0 %v204
    %241 = vmatpush1.bf16.msra.mxu0 %v203
    %242 = vmatprep.subr.bf16.mxu0 %v201
    %243 = vmatpush1.bf16.msra.mxu0 %v200
    %244 = vmatprep.subr.bf16.mxu0 %v198
    %245 = vmatpush1.bf16.msra.mxu0 %v197
    %246 = vmatprep.subr.bf16.mxu0 %v195
    %247 = vmatpush1.bf16.msra.mxu0 %v194
    %248 = vmatprep.subr.bf16.mxu0 %v192
    %249 = vmatpush1.bf16.msra.mxu0 %v191
    %250 = vmatprep.subr.bf16.mxu0 %v189
    %251 = vmatpush1.bf16.msra.mxu0 %v188
    %252 = vmatprep.subr.bf16.mxu0 0
    %253 = vmatpush2.bf16.msra.mxu0 0
    %254 = vmatprep.subr.bf16.mxu0 0
    %255 = vmatpush2.bf16.msra.mxu0 0
    %256 = vmatprep.subr.bf16.mxu0 0
    %257 = vmatpush2.bf16.msra.mxu0 0
    %258 = vmatprep.subr.bf16.mxu0 0
    %259 = vmatpush2.bf16.msra.mxu0 0
    %260 = vmatprep.subr.bf16.mxu0 0
    %261 = vmatpush2.bf16.msra.mxu0 0
    %262 = vmatprep.subr.bf16.mxu0 0
    %263 = vmatpush2.bf16.msra.mxu0 0
    %264 = vmatprep.subr.bf16.mxu0 0
    %265 = vmatpush2.bf16.msra.mxu0 0
    %266 = vmatprep.subr.bf16.mxu0 0
    %267 = vmatpush2.bf16.msra.mxu0 0
    %268 = vmatprep.mubr.bf16.mxu0 0
    %269 = vmatmul.mubr.bf16.gmra.mxu0 %v102
    %v270 = vpop.f32.mrf.mxu0
    %v271 = vadd.f32 %v104, %v270
    %v272 = vpop.f32.mrf.mxu0
    %v273 = vadd.f32 %v105, %v272
    %v274 = vpop.f32.mrf.mxu0
    %v275 = vpop.f32.mrf.mxu0
    %276 = vdwg.mxu0
    %277 = vmatprep.subr.bf16.mxu0 0
    %278 = vmatpush1.bf16.msra.mxu0 %v211
    %279 = vmatprep.subr.bf16.mxu0 0
    %280 = vmatpush1.bf16.msra.mxu0 %v208
    %281 = vmatprep.subr.bf16.mxu0 0
    %282 = vmatpush1.bf16.msra.mxu0 %v205
    %283 = vmatprep.subr.bf16.mxu0 0
    %284 = vmatpush1.bf16.msra.mxu0 %v202
    %285 = vmatprep.subr.bf16.mxu0 0
    %286 = vmatpush1.bf16.msra.mxu0 %v199
    %287 = vmatprep.subr.bf16.mxu0 0
    %288 = vmatpush1.bf16.msra.mxu0 %v196
    %289 = vmatprep.subr.bf16.mxu0 0
    %290 = vmatpush1.bf16.msra.mxu0 %v193
    %291 = vmatprep.subr.bf16.mxu0 0
    %292 = vmatpush1.bf16.msra.mxu0 %v190
    %293 = vmatprep.subr.bf16.mxu0 0
    %294 = vmatpush2.bf16.msra.mxu0 0
    %295 = vmatprep.subr.bf16.mxu0 0
    %296 = vmatpush2.bf16.msra.mxu0 0
    %297 = vmatprep.subr.bf16.mxu0 0
    %298 = vmatpush2.bf16.msra.mxu0 0
    %299 = vmatprep.subr.bf16.mxu0 0
    %300 = vmatpush2.bf16.msra.mxu0 0
    %301 = vmatprep.subr.bf16.mxu0 0
    %302 = vmatpush2.bf16.msra.mxu0 0
    %303 = vmatprep.subr.bf16.mxu0 0
    %304 = vmatpush2.bf16.msra.mxu0 0
    %305 = vmatprep.subr.bf16.mxu0 0
    %306 = vmatpush2.bf16.msra.mxu0 0
    %307 = vmatprep.subr.bf16.mxu0 0
    %308 = vmatpush2.bf16.msra.mxu0 0
    %309 = vmatprep.mubr.bf16.mxu0 0
    %310 = vmatmul.mubr.bf16.gmra.mxu0 %v102
    %v311 = vpop.f32.mrf.mxu0
    %v312 = vadd.f32 %v106, %v311
    %v313 = vpop.f32.mrf.mxu0
    %v314 = vpop.f32.mrf.mxu0
    %v315 = vpop.f32.mrf.mxu0
    %316 = vdwg.mxu0
    %v333 = vunpack.c.l.b16 %v51
    %v334 = vunpack.c.l.b16 %v52
    %v335 = vunpack.c.l.b16 %v53
    %v336 = vunpack.c.l.b16 %v54
    %v337 = vunpack.c.l.b16 %v55
    %v338 = vunpack.c.l.b16 %v56
    %v339 = vunpack.c.l.b16 %v57
    %v340 = vunpack.c.l.b16 %v58
    %v341 = vunpack.c.l.b16 %v59
    %v342 = vunpack.c.l.b16 %v60
    %v343 = vunpack.c.l.b16 %v61
    %v344 = vunpack.c.l.b16 %v62
    %v345 = vunpack.c.l.b16 %v63
    %v346 = vunpack.c.l.b16 %v64
    %v347 = vunpack.c.l.b16 %v65
    %v348 = vunpack.c.l.b16 %v66
    %v349 = vpack.c.b16 %v334, %v333
    %v350 = vpack.c.b16 %v336, %v335
    %v351 = vpack.c.b16 %v338, %v337
    %v352 = vpack.c.b16 %v340, %v339
    %v353 = vpack.c.b16 %v342, %v341
    %v354 = vpack.c.b16 %v344, %v343
    %v355 = vpack.c.b16 %v346, %v345
    %v356 = vpack.c.b16 %v348, %v347
    %365 = vmatprep.subr.bf16.mxu0 0
    %366 = vmatpush1.bf16.msra.mxu0 %v356
    %367 = vmatprep.subr.bf16.mxu0 0
    %368 = vmatpush1.bf16.msra.mxu0 %v355
    %369 = vmatprep.subr.bf16.mxu0 0
    %370 = vmatpush1.bf16.msra.mxu0 %v354
    %371 = vmatprep.subr.bf16.mxu0 0
    %372 = vmatpush1.bf16.msra.mxu0 %v353
    %373 = vmatprep.subr.bf16.mxu0 0
    %374 = vmatpush1.bf16.msra.mxu0 %v352
    %375 = vmatprep.subr.bf16.mxu0 0
    %376 = vmatpush1.bf16.msra.mxu0 %v351
    %377 = vmatprep.subr.bf16.mxu0 0
    %378 = vmatpush1.bf16.msra.mxu0 %v350
    %379 = vmatprep.subr.bf16.mxu0 0
    %380 = vmatpush1.bf16.msra.mxu0 %v349
    %381 = vmatprep.subr.bf16.mxu0 0
    %382 = vmatpush2.bf16.msra.mxu0 0
    %383 = vmatprep.subr.bf16.mxu0 0
    %384 = vmatpush2.bf16.msra.mxu0 0
    %385 = vmatprep.subr.bf16.mxu0 0
    %386 = vmatpush2.bf16.msra.mxu0 0
    %387 = vmatprep.subr.bf16.mxu0 0
    %388 = vmatpush2.bf16.msra.mxu0 0
    %389 = vmatprep.subr.bf16.mxu0 0
    %390 = vmatpush2.bf16.msra.mxu0 0
    %391 = vmatprep.subr.bf16.mxu0 0
    %392 = vmatpush2.bf16.msra.mxu0 0
    %393 = vmatprep.subr.bf16.mxu0 0
    %394 = vmatpush2.bf16.msra.mxu0 0
    %395 = vmatprep.subr.bf16.mxu0 0
    %396 = vmatpush2.bf16.msra.mxu0 0
    %397 = vmatprep.mubr.bf16.mxu0 0
    %398 = vmatmul.mubr.bf16.gmra.mxu0 %v102
    %v399 = vpop.f32.mrf.mxu0
    %v400 = vadd.f32 %v107, %v399
    %v401 = vpop.f32.mrf.mxu0
    %v402 = vpop.f32.mrf.mxu0
    %v403 = vpop.f32.mrf.mxu0
    %404 = vdwg.mxu0
    %v405 = vxor.u32 %v271, 2147483648
    %v406 = vmul.f32 %v405, 1.442695
    %v407 = vpow.pop %v406
    %v408 = vadd.f32 %v407, 1.0
    %v409 = vrcp.pop %v408
    %v410 = vmul.f32 1.0, %v409
    %v411 = vxor.u32 %v273, 2147483648
    %v412 = vmul.f32 %v411, 1.442695
    %v413 = vpow.pop %v412
    %v414 = vadd.f32 %v413, 1.0
    %v415 = vrcp.pop %v414
    %v416 = vmul.f32 1.0, %v415
    %v417 = vtanh.pop %v312
    %v418 = vmul.f32 %v416, %v99
    %v419 = vmul.f32 %v410, %v417
    %v420 = vadd.f32 %v418, %v419
    %v421 = vxor.u32 %v400, 2147483648
    %v422 = vmul.f32 %v421, 1.442695
    %v423 = vpow.pop %v422
    %v424 = vadd.f32 %v423, 1.0
    %v425 = vrcp.pop %v424
    %v426 = vmul.f32 1.0, %v425
    %v427 = vtanh.pop %v420
    %v428 = vmul.f32 %v426, %v427
    %v429 = vpack.c.bf16 %v428, %v428
    %s430 = scalar_lea.vmem %s1, 64
    %v431 = vld [vmem:[%s430] sm:$0xff]
    %v432 = vld [vmem:[%s430 + $0x8] sm:$0xff]
    %v433 = vld [vmem:[%s430 + $0x10] sm:$0xff]
    %v434 = vld [vmem:[%s430 + $0x18] sm:$0xff]
    %435 = vmatprep.subr.bf16.mxu0 %v210
    %436 = vmatpush1.bf16.msra.mxu0 %v209
    %437 = vmatprep.subr.bf16.mxu0 %v207
    %438 = vmatpush1.bf16.msra.mxu0 %v206
    %439 = vmatprep.subr.bf16.mxu0 %v204
    %440 = vmatpush1.bf16.msra.mxu0 %v203
    %441 = vmatprep.subr.bf16.mxu0 %v201
    %442 = vmatpush1.bf16.msra.mxu0 %v200
    %443 = vmatprep.subr.bf16.mxu0 %v198
    %444 = vmatpush1.bf16.msra.mxu0 %v197
    %445 = vmatprep.subr.bf16.mxu0 %v195
    %446 = vmatpush1.bf16.msra.mxu0 %v194
    %447 = vmatprep.subr.bf16.mxu0 %v192
    %448 = vmatpush1.bf16.msra.mxu0 %v191
    %449 = vmatprep.subr.bf16.mxu0 %v189
    %450 = vmatpush1.bf16.msra.mxu0 %v188
    %451 = vmatprep.subr.bf16.mxu0 0
    %452 = vmatpush2.bf16.msra.mxu0 0
    %453 = vmatprep.subr.bf16.mxu0 0
    %454 = vmatpush2.bf16.msra.mxu0 0
    %455 = vmatprep.subr.bf16.mxu0 0
    %456 = vmatpush2.bf16.msra.mxu0 0
    %457 = vmatprep.subr.bf16.mxu0 0
    %458 = vmatpush2.bf16.msra.mxu0 0
    %459 = vmatprep.subr.bf16.mxu0 0
    %460 = vmatpush2.bf16.msra.mxu0 0
    %461 = vmatprep.subr.bf16.mxu0 0
    %462 = vmatpush2.bf16.msra.mxu0 0
    %463 = vmatprep.subr.bf16.mxu0 0
    %464 = vmatpush2.bf16.msra.mxu0 0
    %465 = vmatprep.subr.bf16.mxu0 0
    %466 = vmatpush2.bf16.msra.mxu0 0
    %467 = vmatprep.mubr.bf16.mxu0 0
    %468 = vmatmul.mubr.bf16.gmra.mxu0 %v429
    %v469 = vpop.f32.mrf.mxu0
    %v470 = vadd.f32 %v431, %v469
    %v471 = vpop.f32.mrf.mxu0
    %v472 = vadd.f32 %v432, %v471
    %v473 = vpop.f32.mrf.mxu0
    %v474 = vpop.f32.mrf.mxu0
    %475 = vdwg.mxu0
    %476 = vmatprep.subr.bf16.mxu0 0
    %477 = vmatpush1.bf16.msra.mxu0 %v211
    %478 = vmatprep.subr.bf16.mxu0 0
    %479 = vmatpush1.bf16.msra.mxu0 %v208
    %480 = vmatprep.subr.bf16.mxu0 0
    %481 = vmatpush1.bf16.msra.mxu0 %v205
    %482 = vmatprep.subr.bf16.mxu0 0
    %483 = vmatpush1.bf16.msra.mxu0 %v202
    %484 = vmatprep.subr.bf16.mxu0 0
    %485 = vmatpush1.bf16.msra.mxu0 %v199
    %486 = vmatprep.subr.bf16.mxu0 0
    %487 = vmatpush1.bf16.msra.mxu0 %v196
    %488 = vmatprep.subr.bf16.mxu0 0
    %489 = vmatpush1.bf16.msra.mxu0 %v193
    %490 = vmatprep.subr.bf16.mxu0 0
    %491 = vmatpush1.bf16.msra.mxu0 %v190
    %492 = vmatprep.subr.bf16.mxu0 0
    %493 = vmatpush2.bf16.msra.mxu0 0
    %494 = vmatprep.subr.bf16.mxu0 0
    %495 = vmatpush2.bf16.msra.mxu0 0
    %496 = vmatprep.subr.bf16.mxu0 0
    %497 = vmatpush2.bf16.msra.mxu0 0
    %498 = vmatprep.subr.bf16.mxu0 0
    %499 = vmatpush2.bf16.msra.mxu0 0
    %500 = vmatprep.subr.bf16.mxu0 0
    %501 = vmatpush2.bf16.msra.mxu0 0
    %502 = vmatprep.subr.bf16.mxu0 0
    %503 = vmatpush2.bf16.msra.mxu0 0
    %504 = vmatprep.subr.bf16.mxu0 0
    %505 = vmatpush2.bf16.msra.mxu0 0
    %506 = vmatprep.subr.bf16.mxu0 0
    %507 = vmatpush2.bf16.msra.mxu0 0
    %508 = vmatprep.mubr.bf16.mxu0 0
    %509 = vmatmul.mubr.bf16.gmra.mxu0 %v429
    %v510 = vpop.f32.mrf.mxu0
    %v511 = vadd.f32 %v433, %v510
    %v512 = vpop.f32.mrf.mxu0
    %v513 = vpop.f32.mrf.mxu0
    %v514 = vpop.f32.mrf.mxu0
    %515 = vdwg.mxu0
    %516 = vmatprep.subr.bf16.mxu0 0
    %517 = vmatpush1.bf16.msra.mxu0 %v356
    %518 = vmatprep.subr.bf16.mxu0 0
    %519 = vmatpush1.bf16.msra.mxu0 %v355
    %520 = vmatprep.subr.bf16.mxu0 0
    %521 = vmatpush1.bf16.msra.mxu0 %v354
    %522 = vmatprep.subr.bf16.mxu0 0
    %523 = vmatpush1.bf16.msra.mxu0 %v353
    %524 = vmatprep.subr.bf16.mxu0 0
    %525 = vmatpush1.bf16.msra.mxu0 %v352
    %526 = vmatprep.subr.bf16.mxu0 0
    %527 = vmatpush1.bf16.msra.mxu0 %v351
    %528 = vmatprep.subr.bf16.mxu0 0
    %529 = vmatpush1.bf16.msra.mxu0 %v350
    %530 = vmatprep.subr.bf16.mxu0 0
    %531 = vmatpush1.bf16.msra.mxu0 %v349
    %532 = vmatprep.subr.bf16.mxu0 0
    %533 = vmatpush2.bf16.msra.mxu0 0
    %534 = vmatprep.subr.bf16.mxu0 0
    %535 = vmatpush2.bf16.msra.mxu0 0
    %536 = vmatprep.subr.bf16.mxu0 0
    %537 = vmatpush2.bf16.msra.mxu0 0
    %538 = vmatprep.subr.bf16.mxu0 0
    %539 = vmatpush2.bf16.msra.mxu0 0
    %540 = vmatprep.subr.bf16.mxu0 0
    %541 = vmatpush2.bf16.msra.mxu0 0
    %542 = vmatprep.subr.bf16.mxu0 0
    %543 = vmatpush2.bf16.msra.mxu0 0
    %544 = vmatprep.subr.bf16.mxu0 0
    %545 = vmatpush2.bf16.msra.mxu0 0
    %546 = vmatprep.subr.bf16.mxu0 0
    %547 = vmatpush2.bf16.msra.mxu0 0
    %548 = vmatprep.mubr.bf16.mxu0 0
    %549 = vmatmul.mubr.bf16.gmra.mxu0 %v429
    %v550 = vpop.f32.mrf.mxu0
    %v551 = vadd.f32 %v434, %v550
    %v552 = vpop.f32.mrf.mxu0
    %v553 = vpop.f32.mrf.mxu0
    %v554 = vpop.f32.mrf.mxu0
    %555 = vdwg.mxu0
    %v556 = vxor.u32 %v470, 2147483648
    %v557 = vmul.f32 %v556, 1.442695
    %v558 = vpow.pop %v557
    %v559 = vadd.f32 %v558, 1.0
    %v560 = vrcp.pop %v559
    %v561 = vmul.f32 1.0, %v560
    %v562 = vxor.u32 %v472, 2147483648
    %v563 = vmul.f32 %v562, 1.442695
    %v564 = vpow.pop %v563
    %v565 = vadd.f32 %v564, 1.0
    %v566 = vrcp.pop %v565
    %v567 = vmul.f32 1.0, %v566
    %v568 = vtanh.pop %v511
    %v569 = vmul.f32 %v567, %v420
    %v570 = vmul.f32 %v561, %v568
    %v571 = vadd.f32 %v569, %v570
    %v572 = vxor.u32 %v551, 2147483648
    %v573 = vmul.f32 %v572, 1.442695
    %v574 = vpow.pop %v573
    %v575 = vadd.f32 %v574, 1.0
    %v576 = vrcp.pop %v575
    %v577 = vmul.f32 1.0, %v576
    %v578 = vtanh.pop %v571
    %v579 = vmul.f32 %v577, %v578
    %v580 = vpack.c.bf16 %v579, %v579
    %s581 = scalar_lea.vmem %s1, 96
    %v582 = vld [vmem:[%s581] sm:$0xff]
    %v583 = vld [vmem:[%s581 + $0x8] sm:$0xff]
    %v584 = vld [vmem:[%s581 + $0x10] sm:$0xff]
    %v585 = vld [vmem:[%s581 + $0x18] sm:$0xff]
    %586 = vmatprep.subr.bf16.mxu0 %v210
    %587 = vmatpush1.bf16.msra.mxu0 %v209
    %588 = vmatprep.subr.bf16.mxu0 %v207
    %589 = vmatpush1.bf16.msra.mxu0 %v206
    %590 = vmatprep.subr.bf16.mxu0 %v204
    %591 = vmatpush1.bf16.msra.mxu0 %v203
    %592 = vmatprep.subr.bf16.mxu0 %v201
    %593 = vmatpush1.bf16.msra.mxu0 %v200
    %594 = vmatprep.subr.bf16.mxu0 %v198
    %595 = vmatpush1.bf16.msra.mxu0 %v197
    %596 = vmatprep.subr.bf16.mxu0 %v195
    %597 = vmatpush1.bf16.msra.mxu0 %v194
    %598 = vmatprep.subr.bf16.mxu0 %v192
    %599 = vmatpush1.bf16.msra.mxu0 %v191
    %600 = vmatprep.subr.bf16.mxu0 %v189
    %601 = vmatpush1.bf16.msra.mxu0 %v188
    %602 = vmatprep.subr.bf16.mxu0 0
    %603 = vmatpush2.bf16.msra.mxu0 0
    %604 = vmatprep.subr.bf16.mxu0 0
    %605 = vmatpush2.bf16.msra.mxu0 0
    %606 = vmatprep.subr.bf16.mxu0 0
    %607 = vmatpush2.bf16.msra.mxu0 0
    %608 = vmatprep.subr.bf16.mxu0 0
    %609 = vmatpush2.bf16.msra.mxu0 0
    %610 = vmatprep.subr.bf16.mxu0 0
    %611 = vmatpush2.bf16.msra.mxu0 0
    %612 = vmatprep.subr.bf16.mxu0 0
    %613 = vmatpush2.bf16.msra.mxu0 0
    %614 = vmatprep.subr.bf16.mxu0 0
    %615 = vmatpush2.bf16.msra.mxu0 0
    %616 = vmatprep.subr.bf16.mxu0 0
    %617 = vmatpush2.bf16.msra.mxu0 0
    %618 = vmatprep.mubr.bf16.mxu0 0
    %619 = vmatmul.mubr.bf16.gmra.mxu0 %v580
    %v620 = vpop.f32.mrf.mxu0
    %v621 = vadd.f32 %v582, %v620
    %v622 = vpop.f32.mrf.mxu0
    %v623 = vadd.f32 %v583, %v622
    %v624 = vpop.f32.mrf.mxu0
    %v625 = vpop.f32.mrf.mxu0
    %626 = vdwg.mxu0
    %627 = vmatprep.subr.bf16.mxu0 0
    %628 = vmatpush1.bf16.msra.mxu0 %v211
    %629 = vmatprep.subr.bf16.mxu0 0
    %630 = vmatpush1.bf16.msra.mxu0 %v208
    %631 = vmatprep.subr.bf16.mxu0 0
    %632 = vmatpush1.bf16.msra.mxu0 %v205
    %633 = vmatprep.subr.bf16.mxu0 0
    %634 = vmatpush1.bf16.msra.mxu0 %v202
    %635 = vmatprep.subr.bf16.mxu0 0
    %636 = vmatpush1.bf16.msra.mxu0 %v199
    %637 = vmatprep.subr.bf16.mxu0 0
    %638 = vmatpush1.bf16.msra.mxu0 %v196
    %639 = vmatprep.subr.bf16.mxu0 0
    %640 = vmatpush1.bf16.msra.mxu0 %v193
    %641 = vmatprep.subr.bf16.mxu0 0
    %642 = vmatpush1.bf16.msra.mxu0 %v190
    %643 = vmatprep.subr.bf16.mxu0 0
    %644 = vmatpush2.bf16.msra.mxu0 0
    %645 = vmatprep.subr.bf16.mxu0 0
    %646 = vmatpush2.bf16.msra.mxu0 0
    %647 = vmatprep.subr.bf16.mxu0 0
    %648 = vmatpush2.bf16.msra.mxu0 0
    %649 = vmatprep.subr.bf16.mxu0 0
    %650 = vmatpush2.bf16.msra.mxu0 0
    %651 = vmatprep.subr.bf16.mxu0 0
    %652 = vmatpush2.bf16.msra.mxu0 0
    %653 = vmatprep.subr.bf16.mxu0 0
    %654 = vmatpush2.bf16.msra.mxu0 0
    %655 = vmatprep.subr.bf16.mxu0 0
    %656 = vmatpush2.bf16.msra.mxu0 0
    %657 = vmatprep.subr.bf16.mxu0 0
    %658 = vmatpush2.bf16.msra.mxu0 0
    %659 = vmatprep.mubr.bf16.mxu0 0
    %660 = vmatmul.mubr.bf16.gmra.mxu0 %v580
    %v661 = vpop.f32.mrf.mxu0
    %v662 = vadd.f32 %v584, %v661
    %v663 = vpop.f32.mrf.mxu0
    %v664 = vpop.f32.mrf.mxu0
    %v665 = vpop.f32.mrf.mxu0
    %666 = vdwg.mxu0
    %667 = vmatprep.subr.bf16.mxu0 0
    %668 = vmatpush1.bf16.msra.mxu0 %v356
    %669 = vmatprep.subr.bf16.mxu0 0
    %670 = vmatpush1.bf16.msra.mxu0 %v355
    %671 = vmatprep.subr.bf16.mxu0 0
    %672 = vmatpush1.bf16.msra.mxu0 %v354
    %673 = vmatprep.subr.bf16.mxu0 0
    %674 = vmatpush1.bf16.msra.mxu0 %v353
    %675 = vmatprep.subr.bf16.mxu0 0
    %676 = vmatpush1.bf16.msra.mxu0 %v352
    %677 = vmatprep.subr.bf16.mxu0 0
    %678 = vmatpush1.bf16.msra.mxu0 %v351
    %679 = vmatprep.subr.bf16.mxu0 0
    %680 = vmatpush1.bf16.msra.mxu0 %v350
    %681 = vmatprep.subr.bf16.mxu0 0
    %682 = vmatpush1.bf16.msra.mxu0 %v349
    %683 = vmatprep.subr.bf16.mxu0 0
    %684 = vmatpush2.bf16.msra.mxu0 0
    %685 = vmatprep.subr.bf16.mxu0 0
    %686 = vmatpush2.bf16.msra.mxu0 0
    %687 = vmatprep.subr.bf16.mxu0 0
    %688 = vmatpush2.bf16.msra.mxu0 0
    %689 = vmatprep.subr.bf16.mxu0 0
    %690 = vmatpush2.bf16.msra.mxu0 0
    %691 = vmatprep.subr.bf16.mxu0 0
    %692 = vmatpush2.bf16.msra.mxu0 0
    %693 = vmatprep.subr.bf16.mxu0 0
    %694 = vmatpush2.bf16.msra.mxu0 0
    %695 = vmatprep.subr.bf16.mxu0 0
    %696 = vmatpush2.bf16.msra.mxu0 0
    %697 = vmatprep.subr.bf16.mxu0 0
    %698 = vmatpush2.bf16.msra.mxu0 0
    %699 = vmatprep.mubr.bf16.mxu0 0
    %700 = vmatmul.mubr.bf16.gmra.mxu0 %v580
    %v701 = vpop.f32.mrf.mxu0
    %v702 = vadd.f32 %v585, %v701
    %v703 = vpop.f32.mrf.mxu0
    %v704 = vpop.f32.mrf.mxu0
    %v705 = vpop.f32.mrf.mxu0
    %706 = vdwg.mxu0
    %v707 = vxor.u32 %v621, 2147483648
    %v708 = vmul.f32 %v707, 1.442695
    %v709 = vpow.pop %v708
    %v710 = vadd.f32 %v709, 1.0
    %v711 = vrcp.pop %v710
    %v712 = vmul.f32 1.0, %v711
    %v713 = vxor.u32 %v623, 2147483648
    %v714 = vmul.f32 %v713, 1.442695
    %v715 = vpow.pop %v714
    %v716 = vadd.f32 %v715, 1.0
    %v717 = vrcp.pop %v716
    %v718 = vmul.f32 1.0, %v717
    %v719 = vtanh.pop %v662
    %v720 = vmul.f32 %v718, %v571
    %v721 = vmul.f32 %v712, %v719
    %v722 = vadd.f32 %v720, %v721
    %v723 = vxor.u32 %v702, 2147483648
    %v724 = vmul.f32 %v723, 1.442695
    %v725 = vpow.pop %v724
    %v726 = vadd.f32 %v725, 1.0
    %v727 = vrcp.pop %v726
    %v728 = vmul.f32 1.0, %v727
    %v729 = vtanh.pop %v722
    %v730 = vmul.f32 %v728, %v729
    %v731 = vpack.c.bf16 %v730, %v730
    %s732 = scalar_lea.vmem %s1, 128
    %v733 = vld [vmem:[%s732] sm:$0xff]
    %v734 = vld [vmem:[%s732 + $0x8] sm:$0xff]
    %v735 = vld [vmem:[%s732 + $0x10] sm:$0xff]
    %v736 = vld [vmem:[%s732 + $0x18] sm:$0xff]
    %737 = vmatprep.subr.bf16.mxu0 %v210
    %738 = vmatpush1.bf16.msra.mxu0 %v209
    %739 = vmatprep.subr.bf16.mxu0 %v207
    %740 = vmatpush1.bf16.msra.mxu0 %v206
    %741 = vmatprep.subr.bf16.mxu0 %v204
    %742 = vmatpush1.bf16.msra.mxu0 %v203
    %743 = vmatprep.subr.bf16.mxu0 %v201
    %744 = vmatpush1.bf16.msra.mxu0 %v200
    %745 = vmatprep.subr.bf16.mxu0 %v198
    %746 = vmatpush1.bf16.msra.mxu0 %v197
    %747 = vmatprep.subr.bf16.mxu0 %v195
    %748 = vmatpush1.bf16.msra.mxu0 %v194
    %749 = vmatprep.subr.bf16.mxu0 %v192
    %750 = vmatpush1.bf16.msra.mxu0 %v191
    %751 = vmatprep.subr.bf16.mxu0 %v189
    %752 = vmatpush1.bf16.msra.mxu0 %v188
    %753 = vmatprep.subr.bf16.mxu0 0
    %754 = vmatpush2.bf16.msra.mxu0 0
    %755 = vmatprep.subr.bf16.mxu0 0
    %756 = vmatpush2.bf16.msra.mxu0 0
    %757 = vmatprep.subr.bf16.mxu0 0
    %758 = vmatpush2.bf16.msra.mxu0 0
    %759 = vmatprep.subr.bf16.mxu0 0
    %760 = vmatpush2.bf16.msra.mxu0 0
    %761 = vmatprep.subr.bf16.mxu0 0
    %762 = vmatpush2.bf16.msra.mxu0 0
    %763 = vmatprep.subr.bf16.mxu0 0
    %764 = vmatpush2.bf16.msra.mxu0 0
    %765 = vmatprep.subr.bf16.mxu0 0
    %766 = vmatpush2.bf16.msra.mxu0 0
    %767 = vmatprep.subr.bf16.mxu0 0
    %768 = vmatpush2.bf16.msra.mxu0 0
    %769 = vmatprep.mubr.bf16.mxu0 0
    %770 = vmatmul.mubr.bf16.gmra.mxu0 %v731
    %v771 = vpop.f32.mrf.mxu0
    %v772 = vadd.f32 %v733, %v771
    %v773 = vpop.f32.mrf.mxu0
    %v774 = vadd.f32 %v734, %v773
    %v775 = vpop.f32.mrf.mxu0
    %v776 = vpop.f32.mrf.mxu0
    %777 = vdwg.mxu0
    %778 = vmatprep.subr.bf16.mxu0 0
    %779 = vmatpush1.bf16.msra.mxu0 %v211
    %780 = vmatprep.subr.bf16.mxu0 0
    %781 = vmatpush1.bf16.msra.mxu0 %v208
    %782 = vmatprep.subr.bf16.mxu0 0
    %783 = vmatpush1.bf16.msra.mxu0 %v205
    %784 = vmatprep.subr.bf16.mxu0 0
    %785 = vmatpush1.bf16.msra.mxu0 %v202
    %786 = vmatprep.subr.bf16.mxu0 0
    %787 = vmatpush1.bf16.msra.mxu0 %v199
    %788 = vmatprep.subr.bf16.mxu0 0
    %789 = vmatpush1.bf16.msra.mxu0 %v196
    %790 = vmatprep.subr.bf16.mxu0 0
    %791 = vmatpush1.bf16.msra.mxu0 %v193
    %792 = vmatprep.subr.bf16.mxu0 0
    %793 = vmatpush1.bf16.msra.mxu0 %v190
    %794 = vmatprep.subr.bf16.mxu0 0
    %795 = vmatpush2.bf16.msra.mxu0 0
    %796 = vmatprep.subr.bf16.mxu0 0
    %797 = vmatpush2.bf16.msra.mxu0 0
    %798 = vmatprep.subr.bf16.mxu0 0
    %799 = vmatpush2.bf16.msra.mxu0 0
    %800 = vmatprep.subr.bf16.mxu0 0
    %801 = vmatpush2.bf16.msra.mxu0 0
    %802 = vmatprep.subr.bf16.mxu0 0
    %803 = vmatpush2.bf16.msra.mxu0 0
    %804 = vmatprep.subr.bf16.mxu0 0
    %805 = vmatpush2.bf16.msra.mxu0 0
    %806 = vmatprep.subr.bf16.mxu0 0
    %807 = vmatpush2.bf16.msra.mxu0 0
    %808 = vmatprep.subr.bf16.mxu0 0
    %809 = vmatpush2.bf16.msra.mxu0 0
    %810 = vmatprep.mubr.bf16.mxu0 0
    %811 = vmatmul.mubr.bf16.gmra.mxu0 %v731
    %v812 = vpop.f32.mrf.mxu0
    %v813 = vadd.f32 %v735, %v812
    %v814 = vpop.f32.mrf.mxu0
    %v815 = vpop.f32.mrf.mxu0
    %v816 = vpop.f32.mrf.mxu0
    %817 = vdwg.mxu0
    %818 = vmatprep.subr.bf16.mxu0 0
    %819 = vmatpush1.bf16.msra.mxu0 %v356
    %820 = vmatprep.subr.bf16.mxu0 0
    %821 = vmatpush1.bf16.msra.mxu0 %v355
    %822 = vmatprep.subr.bf16.mxu0 0
    %823 = vmatpush1.bf16.msra.mxu0 %v354
    %824 = vmatprep.subr.bf16.mxu0 0
    %825 = vmatpush1.bf16.msra.mxu0 %v353
    %826 = vmatprep.subr.bf16.mxu0 0
    %827 = vmatpush1.bf16.msra.mxu0 %v352
    %828 = vmatprep.subr.bf16.mxu0 0
    %829 = vmatpush1.bf16.msra.mxu0 %v351
    %830 = vmatprep.subr.bf16.mxu0 0
    %831 = vmatpush1.bf16.msra.mxu0 %v350
    %832 = vmatprep.subr.bf16.mxu0 0
    %833 = vmatpush1.bf16.msra.mxu0 %v349
    %834 = vmatprep.subr.bf16.mxu0 0
    %835 = vmatpush2.bf16.msra.mxu0 0
    %836 = vmatprep.subr.bf16.mxu0 0
    %837 = vmatpush2.bf16.msra.mxu0 0
    %838 = vmatprep.subr.bf16.mxu0 0
    %839 = vmatpush2.bf16.msra.mxu0 0
    %840 = vmatprep.subr.bf16.mxu0 0
    %841 = vmatpush2.bf16.msra.mxu0 0
    %842 = vmatprep.subr.bf16.mxu0 0
    %843 = vmatpush2.bf16.msra.mxu0 0
    %844 = vmatprep.subr.bf16.mxu0 0
    %845 = vmatpush2.bf16.msra.mxu0 0
    %846 = vmatprep.subr.bf16.mxu0 0
    %847 = vmatpush2.bf16.msra.mxu0 0
    %848 = vmatprep.subr.bf16.mxu0 0
    %849 = vmatpush2.bf16.msra.mxu0 0
    %850 = vmatprep.mubr.bf16.mxu0 0
    %851 = vmatmul.mubr.bf16.gmra.mxu0 %v731
    %v852 = vpop.f32.mrf.mxu0
    %v853 = vadd.f32 %v736, %v852
    %v854 = vpop.f32.mrf.mxu0
    %v855 = vpop.f32.mrf.mxu0
    %v856 = vpop.f32.mrf.mxu0
    %857 = vdwg.mxu0
    %v858 = vxor.u32 %v772, 2147483648
    %v859 = vmul.f32 %v858, 1.442695
    %v860 = vpow.pop %v859
    %v861 = vadd.f32 %v860, 1.0
    %v862 = vrcp.pop %v861
    %v863 = vmul.f32 1.0, %v862
    %v864 = vxor.u32 %v774, 2147483648
    %v865 = vmul.f32 %v864, 1.442695
    %v866 = vpow.pop %v865
    %v867 = vadd.f32 %v866, 1.0
    %v868 = vrcp.pop %v867
    %v869 = vmul.f32 1.0, %v868
    %v870 = vtanh.pop %v813
    %v871 = vmul.f32 %v869, %v722
    %v872 = vmul.f32 %v863, %v870
    %v873 = vadd.f32 %v871, %v872
    %v874 = vxor.u32 %v853, 2147483648
    %v875 = vmul.f32 %v874, 1.442695
    %v876 = vpow.pop %v875
    %v877 = vadd.f32 %v876, 1.0
    %v878 = vrcp.pop %v877
    %v879 = vmul.f32 1.0, %v878
    %v880 = vtanh.pop %v873
    %v881 = vmul.f32 %v879, %v880
    %v882 = vpack.c.bf16 %v881, %v881
    %s883 = scalar_lea.vmem %s1, 160
    %v884 = vld [vmem:[%s883] sm:$0xff]
    %v885 = vld [vmem:[%s883 + $0x8] sm:$0xff]
    %v886 = vld [vmem:[%s883 + $0x10] sm:$0xff]
    %v887 = vld [vmem:[%s883 + $0x18] sm:$0xff]
    %888 = vmatprep.subr.bf16.mxu0 %v210
    %889 = vmatpush1.bf16.msra.mxu0 %v209
    %890 = vmatprep.subr.bf16.mxu0 %v207
    %891 = vmatpush1.bf16.msra.mxu0 %v206
    %892 = vmatprep.subr.bf16.mxu0 %v204
    %893 = vmatpush1.bf16.msra.mxu0 %v203
    %894 = vmatprep.subr.bf16.mxu0 %v201
    %895 = vmatpush1.bf16.msra.mxu0 %v200
    %896 = vmatprep.subr.bf16.mxu0 %v198
    %897 = vmatpush1.bf16.msra.mxu0 %v197
    %898 = vmatprep.subr.bf16.mxu0 %v195
    %899 = vmatpush1.bf16.msra.mxu0 %v194
    %900 = vmatprep.subr.bf16.mxu0 %v192
    %901 = vmatpush1.bf16.msra.mxu0 %v191
    %902 = vmatprep.subr.bf16.mxu0 %v189
    %903 = vmatpush1.bf16.msra.mxu0 %v188
    %904 = vmatprep.subr.bf16.mxu0 0
    %905 = vmatpush2.bf16.msra.mxu0 0
    %906 = vmatprep.subr.bf16.mxu0 0
    %907 = vmatpush2.bf16.msra.mxu0 0
    %908 = vmatprep.subr.bf16.mxu0 0
    %909 = vmatpush2.bf16.msra.mxu0 0
    %910 = vmatprep.subr.bf16.mxu0 0
    %911 = vmatpush2.bf16.msra.mxu0 0
    %912 = vmatprep.subr.bf16.mxu0 0
    %913 = vmatpush2.bf16.msra.mxu0 0
    %914 = vmatprep.subr.bf16.mxu0 0
    %915 = vmatpush2.bf16.msra.mxu0 0
    %916 = vmatprep.subr.bf16.mxu0 0
    %917 = vmatpush2.bf16.msra.mxu0 0
    %918 = vmatprep.subr.bf16.mxu0 0
    %919 = vmatpush2.bf16.msra.mxu0 0
    %920 = vmatprep.mubr.bf16.mxu0 0
    %921 = vmatmul.mubr.bf16.gmra.mxu0 %v882
    %v922 = vpop.f32.mrf.mxu0
    %v923 = vadd.f32 %v884, %v922
    %v924 = vpop.f32.mrf.mxu0
    %v925 = vadd.f32 %v885, %v924
    %v926 = vpop.f32.mrf.mxu0
    %v927 = vpop.f32.mrf.mxu0
    %928 = vdwg.mxu0
    %929 = vmatprep.subr.bf16.mxu0 0
    %930 = vmatpush1.bf16.msra.mxu0 %v211
    %931 = vmatprep.subr.bf16.mxu0 0
    %932 = vmatpush1.bf16.msra.mxu0 %v208
    %933 = vmatprep.subr.bf16.mxu0 0
    %934 = vmatpush1.bf16.msra.mxu0 %v205
    %935 = vmatprep.subr.bf16.mxu0 0
    %936 = vmatpush1.bf16.msra.mxu0 %v202
    %937 = vmatprep.subr.bf16.mxu0 0
    %938 = vmatpush1.bf16.msra.mxu0 %v199
    %939 = vmatprep.subr.bf16.mxu0 0
    %940 = vmatpush1.bf16.msra.mxu0 %v196
    %941 = vmatprep.subr.bf16.mxu0 0
    %942 = vmatpush1.bf16.msra.mxu0 %v193
    %943 = vmatprep.subr.bf16.mxu0 0
    %944 = vmatpush1.bf16.msra.mxu0 %v190
    %945 = vmatprep.subr.bf16.mxu0 0
    %946 = vmatpush2.bf16.msra.mxu0 0
    %947 = vmatprep.subr.bf16.mxu0 0
    %948 = vmatpush2.bf16.msra.mxu0 0
    %949 = vmatprep.subr.bf16.mxu0 0
    %950 = vmatpush2.bf16.msra.mxu0 0
    %951 = vmatprep.subr.bf16.mxu0 0
    %952 = vmatpush2.bf16.msra.mxu0 0
    %953 = vmatprep.subr.bf16.mxu0 0
    %954 = vmatpush2.bf16.msra.mxu0 0
    %955 = vmatprep.subr.bf16.mxu0 0
    %956 = vmatpush2.bf16.msra.mxu0 0
    %957 = vmatprep.subr.bf16.mxu0 0
    %958 = vmatpush2.bf16.msra.mxu0 0
    %959 = vmatprep.subr.bf16.mxu0 0
    %960 = vmatpush2.bf16.msra.mxu0 0
    %961 = vmatprep.mubr.bf16.mxu0 0
    %962 = vmatmul.mubr.bf16.gmra.mxu0 %v882
    %v963 = vpop.f32.mrf.mxu0
    %v964 = vadd.f32 %v886, %v963
    %v965 = vpop.f32.mrf.mxu0
    %v966 = vpop.f32.mrf.mxu0
    %v967 = vpop.f32.mrf.mxu0
    %968 = vdwg.mxu0
    %969 = vmatprep.subr.bf16.mxu0 0
    %970 = vmatpush1.bf16.msra.mxu0 %v356
    %971 = vmatprep.subr.bf16.mxu0 0
    %972 = vmatpush1.bf16.msra.mxu0 %v355
    %973 = vmatprep.subr.bf16.mxu0 0
    %974 = vmatpush1.bf16.msra.mxu0 %v354
    %975 = vmatprep.subr.bf16.mxu0 0
    %976 = vmatpush1.bf16.msra.mxu0 %v353
    %977 = vmatprep.subr.bf16.mxu0 0
    %978 = vmatpush1.bf16.msra.mxu0 %v352
    %979 = vmatprep.subr.bf16.mxu0 0
    %980 = vmatpush1.bf16.msra.mxu0 %v351
    %981 = vmatprep.subr.bf16.mxu0 0
    %982 = vmatpush1.bf16.msra.mxu0 %v350
    %983 = vmatprep.subr.bf16.mxu0 0
    %984 = vmatpush1.bf16.msra.mxu0 %v349
    %985 = vmatprep.subr.bf16.mxu0 0
    %986 = vmatpush2.bf16.msra.mxu0 0
    %987 = vmatprep.subr.bf16.mxu0 0
    %988 = vmatpush2.bf16.msra.mxu0 0
    %989 = vmatprep.subr.bf16.mxu0 0
    %990 = vmatpush2.bf16.msra.mxu0 0
    %991 = vmatprep.subr.bf16.mxu0 0
    %992 = vmatpush2.bf16.msra.mxu0 0
    %993 = vmatprep.subr.bf16.mxu0 0
    %994 = vmatpush2.bf16.msra.mxu0 0
    %995 = vmatprep.subr.bf16.mxu0 0
    %996 = vmatpush2.bf16.msra.mxu0 0
    %997 = vmatprep.subr.bf16.mxu0 0
    %998 = vmatpush2.bf16.msra.mxu0 0
    %999 = vmatprep.subr.bf16.mxu0 0
    %1000 = vmatpush2.bf16.msra.mxu0 0
    %1001 = vmatprep.mubr.bf16.mxu0 0
    %1002 = vmatmul.mubr.bf16.gmra.mxu0 %v882
    %v1003 = vpop.f32.mrf.mxu0
    %v1004 = vadd.f32 %v887, %v1003
    %v1005 = vpop.f32.mrf.mxu0
    %v1006 = vpop.f32.mrf.mxu0
    %v1007 = vpop.f32.mrf.mxu0
    %1008 = vdwg.mxu0
    %v1009 = vxor.u32 %v923, 2147483648
    %v1010 = vmul.f32 %v1009, 1.442695
    %v1011 = vpow.pop %v1010
    %v1012 = vadd.f32 %v1011, 1.0
    %v1013 = vrcp.pop %v1012
    %v1014 = vmul.f32 1.0, %v1013
    %v1015 = vxor.u32 %v925, 2147483648
    %v1016 = vmul.f32 %v1015, 1.442695
    %v1017 = vpow.pop %v1016
    %v1018 = vadd.f32 %v1017, 1.0
    %v1019 = vrcp.pop %v1018
    %v1020 = vmul.f32 1.0, %v1019
    %v1021 = vtanh.pop %v964
    %v1022 = vmul.f32 %v1020, %v873
    %v1023 = vmul.f32 %v1014, %v1021
    %v1024 = vadd.f32 %v1022, %v1023
    %v1025 = vxor.u32 %v1004, 2147483648
    %v1026 = vmul.f32 %v1025, 1.442695
    %v1027 = vpow.pop %v1026
    %v1028 = vadd.f32 %v1027, 1.0
    %v1029 = vrcp.pop %v1028
    %v1030 = vmul.f32 1.0, %v1029
    %v1031 = vtanh.pop %v1024
    %v1032 = vmul.f32 %v1030, %v1031
    %v1033 = vpack.c.bf16 %v1032, %v1032
    %s1034 = scalar_lea.vmem %s1, 192
    %v1035 = vld [vmem:[%s1034] sm:$0xff]
    %v1036 = vld [vmem:[%s1034 + $0x8] sm:$0xff]
    %v1037 = vld [vmem:[%s1034 + $0x10] sm:$0xff]
    %v1038 = vld [vmem:[%s1034 + $0x18] sm:$0xff]
    %1039 = vmatprep.subr.bf16.mxu0 %v210
    %1040 = vmatpush1.bf16.msra.mxu0 %v209
    %1041 = vmatprep.subr.bf16.mxu0 %v207
    %1042 = vmatpush1.bf16.msra.mxu0 %v206
    %1043 = vmatprep.subr.bf16.mxu0 %v204
    %1044 = vmatpush1.bf16.msra.mxu0 %v203
    %1045 = vmatprep.subr.bf16.mxu0 %v201
    %1046 = vmatpush1.bf16.msra.mxu0 %v200
    %1047 = vmatprep.subr.bf16.mxu0 %v198
    %1048 = vmatpush1.bf16.msra.mxu0 %v197
    %1049 = vmatprep.subr.bf16.mxu0 %v195
    %1050 = vmatpush1.bf16.msra.mxu0 %v194
    %1051 = vmatprep.subr.bf16.mxu0 %v192
    %1052 = vmatpush1.bf16.msra.mxu0 %v191
    %1053 = vmatprep.subr.bf16.mxu0 %v189
    %1054 = vmatpush1.bf16.msra.mxu0 %v188
    %1055 = vmatprep.subr.bf16.mxu0 0
    %1056 = vmatpush2.bf16.msra.mxu0 0
    %1057 = vmatprep.subr.bf16.mxu0 0
    %1058 = vmatpush2.bf16.msra.mxu0 0
    %1059 = vmatprep.subr.bf16.mxu0 0
    %1060 = vmatpush2.bf16.msra.mxu0 0
    %1061 = vmatprep.subr.bf16.mxu0 0
    %1062 = vmatpush2.bf16.msra.mxu0 0
    %1063 = vmatprep.subr.bf16.mxu0 0
    %1064 = vmatpush2.bf16.msra.mxu0 0
    %1065 = vmatprep.subr.bf16.mxu0 0
    %1066 = vmatpush2.bf16.msra.mxu0 0
    %1067 = vmatprep.subr.bf16.mxu0 0
    %1068 = vmatpush2.bf16.msra.mxu0 0
    %1069 = vmatprep.subr.bf16.mxu0 0
    %1070 = vmatpush2.bf16.msra.mxu0 0
    %1071 = vmatprep.mubr.bf16.mxu0 0
    %1072 = vmatmul.mubr.bf16.gmra.mxu0 %v1033
    %v1073 = vpop.f32.mrf.mxu0
    %v1074 = vadd.f32 %v1035, %v1073
    %v1075 = vpop.f32.mrf.mxu0
    %v1076 = vadd.f32 %v1036, %v1075
    %v1077 = vpop.f32.mrf.mxu0
    %v1078 = vpop.f32.mrf.mxu0
    %1079 = vdwg.mxu0
    %1080 = vmatprep.subr.bf16.mxu0 0
    %1081 = vmatpush1.bf16.msra.mxu0 %v211
    %1082 = vmatprep.subr.bf16.mxu0 0
    %1083 = vmatpush1.bf16.msra.mxu0 %v208
    %1084 = vmatprep.subr.bf16.mxu0 0
    %1085 = vmatpush1.bf16.msra.mxu0 %v205
    %1086 = vmatprep.subr.bf16.mxu0 0
    %1087 = vmatpush1.bf16.msra.mxu0 %v202
    %1088 = vmatprep.subr.bf16.mxu0 0
    %1089 = vmatpush1.bf16.msra.mxu0 %v199
    %1090 = vmatprep.subr.bf16.mxu0 0
    %1091 = vmatpush1.bf16.msra.mxu0 %v196
    %1092 = vmatprep.subr.bf16.mxu0 0
    %1093 = vmatpush1.bf16.msra.mxu0 %v193
    %1094 = vmatprep.subr.bf16.mxu0 0
    %1095 = vmatpush1.bf16.msra.mxu0 %v190
    %1096 = vmatprep.subr.bf16.mxu0 0
    %1097 = vmatpush2.bf16.msra.mxu0 0
    %1098 = vmatprep.subr.bf16.mxu0 0
    %1099 = vmatpush2.bf16.msra.mxu0 0
    %1100 = vmatprep.subr.bf16.mxu0 0
    %1101 = vmatpush2.bf16.msra.mxu0 0
    %1102 = vmatprep.subr.bf16.mxu0 0
    %1103 = vmatpush2.bf16.msra.mxu0 0
    %1104 = vmatprep.subr.bf16.mxu0 0
    %1105 = vmatpush2.bf16.msra.mxu0 0
    %1106 = vmatprep.subr.bf16.mxu0 0
    %1107 = vmatpush2.bf16.msra.mxu0 0
    %1108 = vmatprep.subr.bf16.mxu0 0
    %1109 = vmatpush2.bf16.msra.mxu0 0
    %1110 = vmatprep.subr.bf16.mxu0 0
    %1111 = vmatpush2.bf16.msra.mxu0 0
    %1112 = vmatprep.mubr.bf16.mxu0 0
    %1113 = vmatmul.mubr.bf16.gmra.mxu0 %v1033
    %v1114 = vpop.f32.mrf.mxu0
    %v1115 = vadd.f32 %v1037, %v1114
    %v1116 = vpop.f32.mrf.mxu0
    %v1117 = vpop.f32.mrf.mxu0
    %v1118 = vpop.f32.mrf.mxu0
    %1119 = vdwg.mxu0
    %1120 = vmatprep.subr.bf16.mxu0 0
    %1121 = vmatpush1.bf16.msra.mxu0 %v356
    %1122 = vmatprep.subr.bf16.mxu0 0
    %1123 = vmatpush1.bf16.msra.mxu0 %v355
    %1124 = vmatprep.subr.bf16.mxu0 0
    %1125 = vmatpush1.bf16.msra.mxu0 %v354
    %1126 = vmatprep.subr.bf16.mxu0 0
    %1127 = vmatpush1.bf16.msra.mxu0 %v353
    %1128 = vmatprep.subr.bf16.mxu0 0
    %1129 = vmatpush1.bf16.msra.mxu0 %v352
    %1130 = vmatprep.subr.bf16.mxu0 0
    %1131 = vmatpush1.bf16.msra.mxu0 %v351
    %1132 = vmatprep.subr.bf16.mxu0 0
    %1133 = vmatpush1.bf16.msra.mxu0 %v350
    %1134 = vmatprep.subr.bf16.mxu0 0
    %1135 = vmatpush1.bf16.msra.mxu0 %v349
    %1136 = vmatprep.subr.bf16.mxu0 0
    %1137 = vmatpush2.bf16.msra.mxu0 0
    %1138 = vmatprep.subr.bf16.mxu0 0
    %1139 = vmatpush2.bf16.msra.mxu0 0
    %1140 = vmatprep.subr.bf16.mxu0 0
    %1141 = vmatpush2.bf16.msra.mxu0 0
    %1142 = vmatprep.subr.bf16.mxu0 0
    %1143 = vmatpush2.bf16.msra.mxu0 0
    %1144 = vmatprep.subr.bf16.mxu0 0
    %1145 = vmatpush2.bf16.msra.mxu0 0
    %1146 = vmatprep.subr.bf16.mxu0 0
    %1147 = vmatpush2.bf16.msra.mxu0 0
    %1148 = vmatprep.subr.bf16.mxu0 0
    %1149 = vmatpush2.bf16.msra.mxu0 0
    %1150 = vmatprep.subr.bf16.mxu0 0
    %1151 = vmatpush2.bf16.msra.mxu0 0
    %1152 = vmatprep.mubr.bf16.mxu0 0
    %1153 = vmatmul.mubr.bf16.gmra.mxu0 %v1033
    %v1154 = vpop.f32.mrf.mxu0
    %v1155 = vadd.f32 %v1038, %v1154
    %v1156 = vpop.f32.mrf.mxu0
    %v1157 = vpop.f32.mrf.mxu0
    %v1158 = vpop.f32.mrf.mxu0
    %1159 = vdwg.mxu0
    %v1160 = vxor.u32 %v1074, 2147483648
    %v1161 = vmul.f32 %v1160, 1.442695
    %v1162 = vpow.pop %v1161
    %v1163 = vadd.f32 %v1162, 1.0
    %v1164 = vrcp.pop %v1163
    %v1165 = vmul.f32 1.0, %v1164
    %v1166 = vxor.u32 %v1076, 2147483648
    %v1167 = vmul.f32 %v1166, 1.442695
    %v1168 = vpow.pop %v1167
    %v1169 = vadd.f32 %v1168, 1.0
    %v1170 = vrcp.pop %v1169
    %v1171 = vmul.f32 1.0, %v1170
    %v1172 = vtanh.pop %v1115
    %v1173 = vmul.f32 %v1171, %v1024
    %v1174 = vmul.f32 %v1165, %v1172
    %v1175 = vadd.f32 %v1173, %v1174
    %v1176 = vxor.u32 %v1155, 2147483648
    %v1177 = vmul.f32 %v1176, 1.442695
    %v1178 = vpow.pop %v1177
    %v1179 = vadd.f32 %v1178, 1.0
    %v1180 = vrcp.pop %v1179
    %v1181 = vmul.f32 1.0, %v1180
    %v1182 = vtanh.pop %v1175
    %v1183 = vmul.f32 %v1181, %v1182
    %v1184 = vpack.c.bf16 %v1183, %v1183
    %s1185 = scalar_lea.vmem %s1, 224
    %v1186 = vld [vmem:[%s1185] sm:$0xff]
    %v1187 = vld [vmem:[%s1185 + $0x8] sm:$0xff]
    %v1188 = vld [vmem:[%s1185 + $0x10] sm:$0xff]
    %v1189 = vld [vmem:[%s1185 + $0x18] sm:$0xff]
    %1190 = vmatprep.subr.bf16.mxu0 %v210
    %1191 = vmatpush1.bf16.msra.mxu0 %v209
    %1192 = vmatprep.subr.bf16.mxu0 %v207
    %1193 = vmatpush1.bf16.msra.mxu0 %v206
    %1194 = vmatprep.subr.bf16.mxu0 %v204
    %1195 = vmatpush1.bf16.msra.mxu0 %v203
    %1196 = vmatprep.subr.bf16.mxu0 %v201
    %1197 = vmatpush1.bf16.msra.mxu0 %v200
    %1198 = vmatprep.subr.bf16.mxu0 %v198
    %1199 = vmatpush1.bf16.msra.mxu0 %v197
    %1200 = vmatprep.subr.bf16.mxu0 %v195
    %1201 = vmatpush1.bf16.msra.mxu0 %v194
    %1202 = vmatprep.subr.bf16.mxu0 %v192
    %1203 = vmatpush1.bf16.msra.mxu0 %v191
    %1204 = vmatprep.subr.bf16.mxu0 %v189
    %1205 = vmatpush1.bf16.msra.mxu0 %v188
    %1206 = vmatprep.subr.bf16.mxu0 0
    %1207 = vmatpush2.bf16.msra.mxu0 0
    %1208 = vmatprep.subr.bf16.mxu0 0
    %1209 = vmatpush2.bf16.msra.mxu0 0
    %1210 = vmatprep.subr.bf16.mxu0 0
    %1211 = vmatpush2.bf16.msra.mxu0 0
    %1212 = vmatprep.subr.bf16.mxu0 0
    %1213 = vmatpush2.bf16.msra.mxu0 0
    %1214 = vmatprep.subr.bf16.mxu0 0
    %1215 = vmatpush2.bf16.msra.mxu0 0
    %1216 = vmatprep.subr.bf16.mxu0 0
    %1217 = vmatpush2.bf16.msra.mxu0 0
    %1218 = vmatprep.subr.bf16.mxu0 0
    %1219 = vmatpush2.bf16.msra.mxu0 0
    %1220 = vmatprep.subr.bf16.mxu0 0
    %1221 = vmatpush2.bf16.msra.mxu0 0
    %1222 = vmatprep.mubr.bf16.mxu0 0
    %1223 = vmatmul.mubr.bf16.gmra.mxu0 %v1184
    %v1224 = vpop.f32.mrf.mxu0
    %v1225 = vadd.f32 %v1186, %v1224
    %v1226 = vpop.f32.mrf.mxu0
    %v1227 = vadd.f32 %v1187, %v1226
    %v1228 = vpop.f32.mrf.mxu0
    %v1229 = vpop.f32.mrf.mxu0
    %1230 = vdwg.mxu0
    %1231 = vmatprep.subr.bf16.mxu0 0
    %1232 = vmatpush1.bf16.msra.mxu0 %v211
    %1233 = vmatprep.subr.bf16.mxu0 0
    %1234 = vmatpush1.bf16.msra.mxu0 %v208
    %1235 = vmatprep.subr.bf16.mxu0 0
    %1236 = vmatpush1.bf16.msra.mxu0 %v205
    %1237 = vmatprep.subr.bf16.mxu0 0
    %1238 = vmatpush1.bf16.msra.mxu0 %v202
    %1239 = vmatprep.subr.bf16.mxu0 0
    %1240 = vmatpush1.bf16.msra.mxu0 %v199
    %1241 = vmatprep.subr.bf16.mxu0 0
    %1242 = vmatpush1.bf16.msra.mxu0 %v196
    %1243 = vmatprep.subr.bf16.mxu0 0
    %1244 = vmatpush1.bf16.msra.mxu0 %v193
    %1245 = vmatprep.subr.bf16.mxu0 0
    %1246 = vmatpush1.bf16.msra.mxu0 %v190
    %1247 = vmatprep.subr.bf16.mxu0 0
    %1248 = vmatpush2.bf16.msra.mxu0 0
    %1249 = vmatprep.subr.bf16.mxu0 0
    %1250 = vmatpush2.bf16.msra.mxu0 0
    %1251 = vmatprep.subr.bf16.mxu0 0
    %1252 = vmatpush2.bf16.msra.mxu0 0
    %1253 = vmatprep.subr.bf16.mxu0 0
    %1254 = vmatpush2.bf16.msra.mxu0 0
    %1255 = vmatprep.subr.bf16.mxu0 0
    %1256 = vmatpush2.bf16.msra.mxu0 0
    %1257 = vmatprep.subr.bf16.mxu0 0
    %1258 = vmatpush2.bf16.msra.mxu0 0
    %1259 = vmatprep.subr.bf16.mxu0 0
    %1260 = vmatpush2.bf16.msra.mxu0 0
    %1261 = vmatprep.subr.bf16.mxu0 0
    %1262 = vmatpush2.bf16.msra.mxu0 0
    %1263 = vmatprep.mubr.bf16.mxu0 0
    %1264 = vmatmul.mubr.bf16.gmra.mxu0 %v1184
    %v1265 = vpop.f32.mrf.mxu0
    %v1266 = vadd.f32 %v1188, %v1265
    %v1267 = vpop.f32.mrf.mxu0
    %v1268 = vpop.f32.mrf.mxu0
    %v1269 = vpop.f32.mrf.mxu0
    %1270 = vdwg.mxu0
    %1271 = vmatprep.subr.bf16.mxu0 0
    %1272 = vmatpush1.bf16.msra.mxu0 %v356
    %1273 = vmatprep.subr.bf16.mxu0 0
    %1274 = vmatpush1.bf16.msra.mxu0 %v355
    %1275 = vmatprep.subr.bf16.mxu0 0
    %1276 = vmatpush1.bf16.msra.mxu0 %v354
    %1277 = vmatprep.subr.bf16.mxu0 0
    %1278 = vmatpush1.bf16.msra.mxu0 %v353
    %1279 = vmatprep.subr.bf16.mxu0 0
    %1280 = vmatpush1.bf16.msra.mxu0 %v352
    %1281 = vmatprep.subr.bf16.mxu0 0
    %1282 = vmatpush1.bf16.msra.mxu0 %v351
    %1283 = vmatprep.subr.bf16.mxu0 0
    %1284 = vmatpush1.bf16.msra.mxu0 %v350
    %1285 = vmatprep.subr.bf16.mxu0 0
    %1286 = vmatpush1.bf16.msra.mxu0 %v349
    %1287 = vmatprep.subr.bf16.mxu0 0
    %1288 = vmatpush2.bf16.msra.mxu0 0
    %1289 = vmatprep.subr.bf16.mxu0 0
    %1290 = vmatpush2.bf16.msra.mxu0 0
    %1291 = vmatprep.subr.bf16.mxu0 0
    %1292 = vmatpush2.bf16.msra.mxu0 0
    %1293 = vmatprep.subr.bf16.mxu0 0
    %1294 = vmatpush2.bf16.msra.mxu0 0
    %1295 = vmatprep.subr.bf16.mxu0 0
    %1296 = vmatpush2.bf16.msra.mxu0 0
    %1297 = vmatprep.subr.bf16.mxu0 0
    %1298 = vmatpush2.bf16.msra.mxu0 0
    %1299 = vmatprep.subr.bf16.mxu0 0
    %1300 = vmatpush2.bf16.msra.mxu0 0
    %1301 = vmatprep.subr.bf16.mxu0 0
    %1302 = vmatpush2.bf16.msra.mxu0 0
    %1303 = vmatprep.mubr.bf16.mxu0 0
    %1304 = vmatmul.mubr.bf16.gmra.mxu0 %v1184
    %v1305 = vpop.f32.mrf.mxu0
    %v1306 = vadd.f32 %v1189, %v1305
    %v1307 = vpop.f32.mrf.mxu0
    %v1308 = vpop.f32.mrf.mxu0
    %v1309 = vpop.f32.mrf.mxu0
    %1310 = vdwg.mxu0
    %v1311 = vxor.u32 %v1225, 2147483648
    %v1312 = vmul.f32 %v1311, 1.442695
    %v1313 = vpow.pop %v1312
    %v1314 = vadd.f32 %v1313, 1.0
    %v1315 = vrcp.pop %v1314
    %v1316 = vmul.f32 1.0, %v1315
    %v1317 = vxor.u32 %v1227, 2147483648
    %v1318 = vmul.f32 %v1317, 1.442695
    %v1319 = vpow.pop %v1318
    %v1320 = vadd.f32 %v1319, 1.0
    %v1321 = vrcp.pop %v1320
    %v1322 = vmul.f32 1.0, %v1321
    %v1323 = vtanh.pop %v1266
    %v1324 = vmul.f32 %v1322, %v1175
    %v1325 = vmul.f32 %v1316, %v1323
    %v1326 = vadd.f32 %v1324, %v1325
    %v1327 = vxor.u32 %v1306, 2147483648
    %v1328 = vmul.f32 %v1327, 1.442695
    %v1329 = vpow.pop %v1328
    %v1330 = vadd.f32 %v1329, 1.0
    %v1331 = vrcp.pop %v1330
    %v1332 = vmul.f32 1.0, %v1331
    %v1333 = vtanh.pop %v1326
    %v1334 = vmul.f32 %v1332, %v1333
    %v1335 = vld [vmem:[%s3] sm:$0x1]
    %v1336 = vld [vmem:[%s3 + $0x1] sm:$0x1]
    %v1337 = vlaneseq
    %v1338 = vshrl.u32 %v1337, 7
    %v1339 = vsub.s32 0, %v1338
    %v1340 = vrot.slane %v1335, %v1339
    %v1341 = vmul.f32 %v101, %v1340
    %1342 = vadd.xlane.f32.xlu0 %v1341
    %v1343 = vpop.xlane.xlu0 %1342
    %v1344 = vlaneseq
    %v1345 = vshrl.u32 %v1344, 7
    %v1346 = vsub.s32 0, %v1345
    %v1347 = vrot.slane %v1336, %v1346
    %v1348 = vadd.f32 %v1343, %v1347
    %v1349 = vmul.f32 %v428, %v1340
    %1350 = vadd.xlane.f32.xlu0 %v1349
    %v1351 = vpop.xlane.xlu0 %1350
    %v1352 = vadd.f32 %v1351, %v1347
    %v1353 = vmul.f32 %v579, %v1340
    %1354 = vadd.xlane.f32.xlu0 %v1353
    %v1355 = vpop.xlane.xlu0 %1354
    %v1356 = vadd.f32 %v1355, %v1347
    %v1357 = vmul.f32 %v730, %v1340
    %1358 = vadd.xlane.f32.xlu0 %v1357
    %v1359 = vpop.xlane.xlu0 %1358
    %v1360 = vadd.f32 %v1359, %v1347
    %v1361 = vmul.f32 %v881, %v1340
    %1362 = vadd.xlane.f32.xlu0 %v1361
    %v1363 = vpop.xlane.xlu0 %1362
    %v1364 = vadd.f32 %v1363, %v1347
    %v1365 = vmul.f32 %v1032, %v1340
    %1366 = vadd.xlane.f32.xlu0 %v1365
    %v1367 = vpop.xlane.xlu0 %1366
    %v1368 = vadd.f32 %v1367, %v1347
    %v1369 = vmul.f32 %v1183, %v1340
    %1370 = vadd.xlane.f32.xlu0 %v1369
    %v1371 = vpop.xlane.xlu0 %1370
    %v1372 = vadd.f32 %v1371, %v1347
    %v1373 = vmul.f32 %v1334, %v1340
    %1374 = vadd.xlane.f32.xlu0 %v1373
    %v1375 = vpop.xlane.xlu0 %1374
    %v1376 = vadd.f32 %v1375, %v1347
    %v1377 = vmax.f32 %v1348, %v1352
    %v1378 = vmax.f32 %v1377, %v1356
    %v1379 = vmax.f32 %v1378, %v1360
    %v1380 = vmax.f32 %v1379, %v1364
    %v1381 = vmax.f32 %v1380, %v1368
    %v1382 = vmax.f32 %v1381, %v1372
    %v1383 = vmax.f32 %v1382, %v1376
    %v1384 = vsub.f32 %v1348, %v1383
    %v1385 = vmul.f32 %v1384, 1.442695
    %v1386 = vpow.pop %v1385
    %v1387 = vsub.f32 %v1352, %v1383
    %v1388 = vmul.f32 %v1387, 1.442695
    %v1389 = vpow.pop %v1388
    %v1390 = vsub.f32 %v1356, %v1383
    %v1391 = vmul.f32 %v1390, 1.442695
    %v1392 = vpow.pop %v1391
    %v1393 = vsub.f32 %v1360, %v1383
    %v1394 = vmul.f32 %v1393, 1.442695
    %v1395 = vpow.pop %v1394
    %v1396 = vsub.f32 %v1364, %v1383
    %v1397 = vmul.f32 %v1396, 1.442695
    %v1398 = vpow.pop %v1397
    %v1399 = vsub.f32 %v1368, %v1383
    %v1400 = vmul.f32 %v1399, 1.442695
    %v1401 = vpow.pop %v1400
    %v1402 = vsub.f32 %v1372, %v1383
    %v1403 = vmul.f32 %v1402, 1.442695
    %v1404 = vpow.pop %v1403
    %v1405 = vsub.f32 %v1376, %v1383
    %v1406 = vmul.f32 %v1405, 1.442695
    %v1407 = vpow.pop %v1406
    %v1408 = vadd.f32 %v1386, %v1389
    %v1409 = vadd.f32 %v1408, %v1392
    %v1410 = vadd.f32 %v1409, %v1395
    %v1411 = vadd.f32 %v1410, %v1398
    %v1412 = vadd.f32 %v1411, %v1401
    %v1413 = vadd.f32 %v1412, %v1404
    %v1414 = vadd.f32 %v1413, %v1407
    %v1415 = vrcp.pop %v1414
    %v1416 = vmul.f32 1.0, %v1415
    %v1417 = vmul.f32 %v1386, %v1416
    %1419 = vset.pattern.permute.xlu0 0
    %1420 = vperm.xlu0 %1419, %v1417
    %v1421 = vpop.permute.xlu0 %1420
    %v1423 = vmul.f32 %v101, %v1421
    %v1424 = vmul.f32 %v1389, %v1416
    %1426 = vset.pattern.permute.xlu0 0
    %1427 = vperm.xlu0 %1426, %v1424
    %v1428 = vpop.permute.xlu0 %1427
    %v1430 = vmul.f32 %v428, %v1428
    %v1431 = vadd.f32 %v1423, %v1430
    %v1432 = vmul.f32 %v1392, %v1416
    %1434 = vset.pattern.permute.xlu0 0
    %1435 = vperm.xlu0 %1434, %v1432
    %v1436 = vpop.permute.xlu0 %1435
    %v1438 = vmul.f32 %v579, %v1436
    %v1439 = vadd.f32 %v1431, %v1438
    %v1440 = vmul.f32 %v1395, %v1416
    %1442 = vset.pattern.permute.xlu0 0
    %1443 = vperm.xlu0 %1442, %v1440
    %v1444 = vpop.permute.xlu0 %1443
    %v1446 = vmul.f32 %v730, %v1444
    %v1447 = vadd.f32 %v1439, %v1446
    %v1448 = vmul.f32 %v1398, %v1416
    %1450 = vset.pattern.permute.xlu0 0
    %1451 = vperm.xlu0 %1450, %v1448
    %v1452 = vpop.permute.xlu0 %1451
    %v1454 = vmul.f32 %v881, %v1452
    %v1455 = vadd.f32 %v1447, %v1454
    %v1456 = vmul.f32 %v1401, %v1416
    %1458 = vset.pattern.permute.xlu0 0
    %1459 = vperm.xlu0 %1458, %v1456
    %v1460 = vpop.permute.xlu0 %1459
    %v1462 = vmul.f32 %v1032, %v1460
    %v1463 = vadd.f32 %v1455, %v1462
    %v1464 = vmul.f32 %v1404, %v1416
    %1466 = vset.pattern.permute.xlu0 0
    %1467 = vperm.xlu0 %1466, %v1464
    %v1468 = vpop.permute.xlu0 %1467
    %v1470 = vmul.f32 %v1183, %v1468
    %v1471 = vadd.f32 %v1463, %v1470
    %v1472 = vmul.f32 %v1407, %v1416
    %1474 = vset.pattern.permute.xlu0 0
    %1475 = vperm.xlu0 %1474, %v1472
    %v1476 = vpop.permute.xlu0 %1475
    %v1478 = vmul.f32 %v1334, %v1476
    %v1479 = vadd.f32 %v1471, %v1478
    %v1481 = vrot.slane %v1479, 2
    %v1483 = vsub.f32 %v1479, %v1481
    %v1484 = vpack.c.bf16 %v1483, %v1483
    %v1501 = vunpack.c.l.b16 %v67
    %v1502 = vunpack.c.l.b16 %v68
    %v1503 = vunpack.c.l.b16 %v69
    %v1504 = vunpack.c.l.b16 %v70
    %v1505 = vunpack.c.l.b16 %v71
    %v1506 = vunpack.c.l.b16 %v72
    %v1507 = vunpack.c.l.b16 %v73
    %v1508 = vunpack.c.l.b16 %v74
    %v1509 = vunpack.c.l.b16 %v75
    %v1510 = vunpack.c.l.b16 %v76
    %v1511 = vunpack.c.l.b16 %v77
    %v1512 = vunpack.c.l.b16 %v78
    %v1513 = vunpack.c.l.b16 %v79
    %v1514 = vunpack.c.l.b16 %v80
    %v1515 = vunpack.c.l.b16 %v81
    %v1516 = vunpack.c.l.b16 %v82
    %v1517 = vpack.c.b16 %v1502, %v1501
    %v1518 = vpack.c.b16 %v1504, %v1503
    %v1519 = vpack.c.b16 %v1506, %v1505
    %v1520 = vpack.c.b16 %v1508, %v1507
    %v1521 = vpack.c.b16 %v1510, %v1509
    %v1522 = vpack.c.b16 %v1512, %v1511
    %v1523 = vpack.c.b16 %v1514, %v1513
    %v1524 = vpack.c.b16 %v1516, %v1515
    %1533 = vmatprep.subr.bf16.mxu0 0
    %1534 = vmatpush1.bf16.msra.mxu0 %v1524
    %1535 = vmatprep.subr.bf16.mxu0 0
    %1536 = vmatpush1.bf16.msra.mxu0 %v1523
    %1537 = vmatprep.subr.bf16.mxu0 0
    %1538 = vmatpush1.bf16.msra.mxu0 %v1522
    %1539 = vmatprep.subr.bf16.mxu0 0
    %1540 = vmatpush1.bf16.msra.mxu0 %v1521
    %1541 = vmatprep.subr.bf16.mxu0 0
    %1542 = vmatpush1.bf16.msra.mxu0 %v1520
    %1543 = vmatprep.subr.bf16.mxu0 0
    %1544 = vmatpush1.bf16.msra.mxu0 %v1519
    %1545 = vmatprep.subr.bf16.mxu0 0
    %1546 = vmatpush1.bf16.msra.mxu0 %v1518
    %1547 = vmatprep.subr.bf16.mxu0 0
    %1548 = vmatpush1.bf16.msra.mxu0 %v1517
    %1549 = vmatprep.subr.bf16.mxu0 0
    %1550 = vmatpush2.bf16.msra.mxu0 0
    %1551 = vmatprep.subr.bf16.mxu0 0
    %1552 = vmatpush2.bf16.msra.mxu0 0
    %1553 = vmatprep.subr.bf16.mxu0 0
    %1554 = vmatpush2.bf16.msra.mxu0 0
    %1555 = vmatprep.subr.bf16.mxu0 0
    %1556 = vmatpush2.bf16.msra.mxu0 0
    %1557 = vmatprep.subr.bf16.mxu0 0
    %1558 = vmatpush2.bf16.msra.mxu0 0
    %1559 = vmatprep.subr.bf16.mxu0 0
    %1560 = vmatpush2.bf16.msra.mxu0 0
    %1561 = vmatprep.subr.bf16.mxu0 0
    %1562 = vmatpush2.bf16.msra.mxu0 0
    %1563 = vmatprep.subr.bf16.mxu0 0
    %1564 = vmatpush2.bf16.msra.mxu0 0
    %1565 = vmatprep.mubr.bf16.mxu0 0
    %1566 = vmatmul.mubr.bf16.gmra.mxu0 %v1484
    %v1567 = vpop.f32.mrf.mxu0
    %v1568 = vadd.f32 0.0, %v1567
    %v1569 = vpop.f32.mrf.mxu0
    %v1570 = vpop.f32.mrf.mxu0
    %v1571 = vpop.f32.mrf.mxu0
    %1572 = vdwg.mxu0
    %v1573 = vmul.f32 %v1568, %v1568
    %vm1574 = vcmask 517120
    %v1575 = vsel %vm1574, %v1573, 0.0
    %1576 = vadd.xlane.f32.xlu0 %v1575
    %v1577 = vpop.xlane.xlu0 %1576
    %v1578 = vmul.f32 %v1577, 0.015625
    %v1579 = vld [vmem:[%s0] sm:$0xff]
    %v1580 = vld [vmem:[%s0 + $0x8] sm:$0xff]
    %v1581 = vld [vmem:[%s0 + $0x10] sm:$0xff]
    %v1582 = vld [vmem:[%s0 + $0x18] sm:$0xff]
    %v1583 = vld [vmem:[%s0 + $0x20] sm:$0xff]
    %v1584 = vld [vmem:[%s0 + $0x28] sm:$0xff]
    %v1585 = vld [vmem:[%s0 + $0x30] sm:$0xff]
    %v1586 = vld [vmem:[%s0 + $0x38] sm:$0xff]
    %v1595 = vrot.slane %v1579, 2
    %v1596 = vrot.slane %v1580, 2
    %v1597 = vrot.slane %v1581, 2
    %v1598 = vrot.slane %v1582, 2
    %v1599 = vrot.slane %v1583, 2
    %v1600 = vrot.slane %v1584, 2
    %v1601 = vrot.slane %v1585, 2
    %v1602 = vrot.slane %v1586, 2
    %v1611 = vsub.f32 %v1579, %v1595
    %v1612 = vsub.f32 %v1580, %v1596
    %v1613 = vsub.f32 %v1581, %v1597
    %v1614 = vsub.f32 %v1582, %v1598
    %v1615 = vsub.f32 %v1583, %v1599
    %v1616 = vsub.f32 %v1584, %v1600
    %v1617 = vsub.f32 %v1585, %v1601
    %v1618 = vsub.f32 %v1586, %v1602
    %v1619 = vmul.f32 %v1611, %v1611
    %v1620 = vmul.f32 %v1612, %v1612
    %v1621 = vmul.f32 %v1613, %v1613
    %v1622 = vmul.f32 %v1614, %v1614
    %v1623 = vmul.f32 %v1615, %v1615
    %v1624 = vmul.f32 %v1616, %v1616
    %v1625 = vmul.f32 %v1617, %v1617
    %v1626 = vmul.f32 %v1618, %v1618
    %vm1627 = vcmask 9216
    %v1628 = vsel %vm1627, %v1619, 0.0
    %v1629 = vsel %vm1627, %v1620, 0.0
    %v1630 = vadd.f32 %v1628, %v1629
    %v1631 = vsel %vm1627, %v1621, 0.0
    %v1632 = vadd.f32 %v1630, %v1631
    %v1633 = vsel %vm1627, %v1622, 0.0
    %v1634 = vadd.f32 %v1632, %v1633
    %v1635 = vsel %vm1627, %v1623, 0.0
    %v1636 = vadd.f32 %v1634, %v1635
    %v1637 = vsel %vm1627, %v1624, 0.0
    %v1638 = vadd.f32 %v1636, %v1637
    %v1639 = vsel %vm1627, %v1625, 0.0
    %v1640 = vadd.f32 %v1638, %v1639
    %v1641 = vsel %vm1627, %v1626, 0.0
    %v1642 = vadd.f32 %v1640, %v1641
    %v1643 = vsel %vm1627, %v1642, 0.0
    %1644 = vadd.xlane.f32.xlu0 %v1643
    %v1645 = vpop.xlane.xlu0 %1644
    %v1646 = vmul.f32 %v1645, 0.0625
    %v1647 = vmul.f32 %v1578, 0.5
    %v1648 = vmul.f32 %v1646, 0.5
    %v1649 = vadd.f32 %v1647, %v1648
    %vm1650 = vcmask 1024
    %v1651 = vsel %vm1650, %v1649, 0.0
    %1652 = vadd.xlane.f32.xlu0 %v1651
    %v1653 = vpop.xlane.xlu0 %1652
    %v1654 = vrot.slane %v1653, 4
    %v1655 = vadd.f32 %v1653, %v1654
    %v1656 = vrot.slane %v1655, 2
    %v1657 = vadd.f32 %v1655, %v1656
    %v1658 = vrot.slane %v1657, 1
    %v1659 = vadd.f32 %v1657, %v1658
    %s1660 = vtos %v1659
    %s1661 = smul.f32 %s1660, 0.5
    %v1662 = vstv %s1661
    %1663 = vst [vmem:[#allocation2] sm:$0xff] %v1662
    // Predicated region
    $region18: #{tpu_custom_call.1} parent=1 // pred_check
      _
    $region19: #{tpu_custom_call.1} parent=1 // pred_check_branch
      %1665 = sbr.rel (0) target = $region21
    $region20: #{tpu_custom_call.1} parent=1 // pred_region
      %s1667 = ssub.s32 128, 128
      %1668 = vsyncadd [#allocation3], %s1667
      %s1670 = sshll.u32 [#allocation2], 4
      %s1671 = int_to_ptr.vmem [resolvable:$true] %s1670
      %1673 = dma.vmem_to_hbm [thread:$0]  %s1671, 128, %s4, [#allocation3]
    $region21: #{tpu_custom_call.1} parent=1 // pred_fallthru
      _
    // Predicated region
    $region22: #{tpu_custom_call.1} parent=1 // pred_check
      _
    $region23: #{tpu_custom_call.1} parent=1 // pred_check_branch
      %1675 = sbr.rel (0) target = $region25
    $region24: #{tpu_custom_call.1} parent=1 // pred_region
      %1676 = dma.done [#allocation3], 128
    $region25: #{tpu_custom_call.1} parent=1 // pred_fallthru
      _
    %1677 = vsyncpa [#allocation3], 1

</llo_original>
